<compile_context>
chip_gen: v5e
topology: v5e:2x2
jax: 0.10.0
libtpu: 0.0.40
codegen_flags: <defaults>
</compile_context>

<pallas_src>
import numpy as np
import jax
import jax.numpy as jnp
from jax.experimental import pallas as pl
from jax.experimental.pallas import tpu as pltpu


# ---------------------------------------------------------------------------
# bilinear (align_corners=False) helpers
# ---------------------------------------------------------------------------
def _round_up(x, m):
    return (x + m - 1) // m * m


def bilinear_taps(out_size, in_size):
    """Per output index: two source indices + lerp weight (matches F.interpolate)."""
    i = np.arange(out_size, dtype=np.float64)
    src = (i + 0.5) * (in_size / out_size) - 0.5
    src = np.clip(src, 0.0, in_size - 1)
    i0 = np.minimum(np.floor(src).astype(np.int64), in_size - 1)
    i1 = np.minimum(i0 + 1, in_size - 1)
    frac = (src - i0).astype(np.float32)
    return i0.astype(np.int32), i1.astype(np.int32), frac


def bilinear_matrix(out_size, in_size):
    i0, i1, frac = bilinear_taps(out_size, in_size)
    A = np.zeros((out_size, in_size), dtype=np.float32)
    A[np.arange(out_size), i0] += 1.0 - frac
    A[np.arange(out_size), i1] += frac
    return A


# ---------------------------------------------------------------------------
# Pallas kernel
# ---------------------------------------------------------------------------
def _make_ffm_kernel(lh, lw, out_w, tile_h):
    """lh, lw: low-res H/W; out_w: output width; tile_h: output rows per grid step."""
    unroll = max(1, min(tile_h, 8))     # LLO visibility without huge code bloat

    def kernel(idx0_ref, idx1_ref, frac_ref,            # scalar-prefetch (SMEM)
               lo_ref, hi_ref, aw_ref,                  # inputs (VMEM)
               w1_ref, b1_ref, w2_ref, w3_ref, b23_ref,
               out_ref,                                 # output (VMEM)
               zw_ref, y_ref):                          # scratch (VMEM)
        th = pl.program_id(1)

        # ---- once per batch element: dwconv at LOW resolution + width pass ----
        @pl.when(th == 0)
        def _():
            # 1x1 conv + folded BN on the low-res map: (lh*lw, C_lo) @ (C_lo, Cop).
            # Conv-before-upsample is exact (both linear; bilinear rows sum to 1),
            # so the bias commutes through the resize as well.
            z = jnp.dot(lo_ref[...], w1_ref[...],
                        preferred_element_type=jnp.float32) + b1_ref[...]
            z = z.astype(zw_ref.dtype)                   # bf16 on the MXU fast path
            aw = aw_ref[...]                             # (out_w, lw), compute dtype
            # separable bilinear, width pass: one tiny matmul per low-res row.
            for i in range(lh):                          # lh static; runs once/image
                blk = z[i * lw:(i + 1) * lw, :]          # (lw, Cop)
                zw_ref[i * out_w:(i + 1) * out_w, :] = jnp.dot(
                    aw, blk, preferred_element_type=jnp.float32).astype(zw_ref.dtype)

        # ---- height pass: 2-tap blend per output row (taps live in SMEM) ----
        def blend_row(t, carry):
            r = th * tile_h + t                          # global output row
            i0 = idx0_ref[r]
            i1 = idx1_ref[r]
            f = frac_ref[r]
            s0 = zw_ref[pl.ds(pl.multiple_of(i0 * out_w, out_w), out_w), :]
            s1 = zw_ref[pl.ds(pl.multiple_of(i1 * out_w, out_w), out_w), :]
            up = s0.astype(jnp.float32) + f * (s1.astype(jnp.float32) -
                                               s0.astype(jnp.float32))
            # the dwconv ReLU applies after the resize in the original module
            y_ref[pl.ds(pl.multiple_of(t * out_w, out_w), out_w), :] = (
                jnp.maximum(up, 0.0).astype(y_ref.dtype))
            return carry

        jax.lax.fori_loop(0, tile_h, blend_row, 0, unroll=unroll)

        # ---- conv_lower_res + conv_higher_res + fuse + final ReLU ----
        # (bias of the two convs is pre-summed in the wrapper: one add per tile)
        lo_out = jnp.dot(y_ref[...], w2_ref[...], preferred_element_type=jnp.float32)
        hi_out = jnp.dot(hi_ref[...], w3_ref[...], preferred_element_type=jnp.float32)
        out_ref[...] = jnp.maximum(lo_out + hi_out + b23_ref[...],
                                   0.0).astype(out_ref.dtype)

    return kernel


# ---------------------------------------------------------------------------
# wrapper
# ---------------------------------------------------------------------------
def feature_fusion(higher_nchw, lower_nchw, params, *,
                   max_rows_per_tile=None,
                   compute_dtype=jnp.bfloat16,
                   out_dtype=None):
    """FeatureFusionModule forward (NCHW in / NCHW out).

    params hold BN-folded 1x1-conv weights: w1/b1 (dwconv), w2/b2
    (conv_lower_res), w3/b3 (conv_higher_res).

    Tiling: use the LARGEST row tile the chip's VMEM allows (the kernel is
    HBM-bound; bigger tiles amortize the ~0.35 us grid-step overhead on every
    generation).  By default the tile and vmem_limit_bytes are derived from
    pltpu.get_tpu_info() (64 MiB/TC on v7x, 128 MiB on v5e/v6e); pass
    max_rows_per_tile (in output pixels, tile_h*W) to override.
    """
    N, c_hi, H, W = higher_nchw.shape
    _, c_lo, h, w = lower_nchw.shape
    c_out = params["w1"].shape[1]
    if out_dtype is None:
        out_dtype = compute_dtype

    LANE = 128
    cop = _round_up(c_out, LANE)        # lane-dense output store (FastSCNN: 128 exact)
    act_b = jnp.dtype(compute_dtype).itemsize
    out_b = jnp.dtype(out_dtype).itemsize

    # layout glue: NCHW -> (N, rows, C). Inputs keep their native channel count
    # (block last dim == full array dim is legal) -> no padding inflation on the
    # high-res read, the largest input stream.
    # TODO(synk): an NCHW-native (channel-major) kernel variant would remove these
    # transposes entirely; kept NHWC-row-major here for lane-dense output stores.
    hi_flat = jnp.transpose(higher_nchw, (0, 2, 3, 1)).reshape(N, H * W, c_hi)
    hi_flat = hi_flat.astype(compute_dtype)
    lo_flat = jnp.transpose(lower_nchw, (0, 2, 3, 1)).reshape(N, h * w, c_lo)
    lo_flat = lo_flat.astype(compute_dtype)

    def pad_cols(mat):
        return jnp.pad(mat, ((0, 0), (0, cop - mat.shape[1]))).astype(compute_dtype)

    def pad_bias(vec):
        return jnp.pad(vec, ((0, 0), (0, cop - vec.shape[1]))).astype(jnp.float32)

    w1 = pad_cols(params["w1"])                                   # (c_lo, cop)
    b1 = pad_bias(params["b1"])                                   # (1, cop)
    w2 = jnp.pad(params["w2"], ((0, cop - params["w2"].shape[0]),
                                (0, cop - params["w2"].shape[1]))).astype(compute_dtype)
    w3 = pad_cols(params["w3"])                                   # (c_hi, cop)
    b23 = pad_bias(params["b2"] + params["b3"])                   # pre-summed fuse bias

    # separable bilinear: width as a tiny dense matrix (compute dtype, VMEM),
    # height as per-row 2-tap indices / weights (scalar-prefetched into SMEM).
    aw = jnp.asarray(bilinear_matrix(W, w)).astype(compute_dtype)  # (W, w)
    h_i0, h_i1, h_f = bilinear_taps(H, h)
    h_i0, h_i1, h_f = jnp.asarray(h_i0), jnp.asarray(h_i1), jnp.asarray(h_f)

    # ---- VMEM budget: derive from the chip instead of hard-coding ----
    try:
        info = pltpu.get_tpu_info()
        vmem_cap = int(getattr(info, "vmem_capacity_bytes", 128 * 1024 * 1024))
    except Exception:                                    # pragma: no cover
        vmem_cap = 128 * 1024 * 1024
    vmem_limit = min(int(vmem_cap * 0.8), vmem_cap - 4 * 1024 * 1024)

    if max_rows_per_tile is None:
        resident = (h * W * cop * act_b                  # zw scratch (per image)
                    + 2 * h * w * c_lo * act_b           # low-res block, double-buffered
                    + (c_lo + cop + c_hi) * cop * act_b  # weights
                    + W * w * act_b + 2 * cop * 4)       # aw + biases
        per_px = (2 * c_hi * act_b                       # hi stream, double-buffered
                  + 2 * cop * out_b                      # out stream, double-buffered
                  + cop * act_b                          # y scratch
                  + 2 * cop * 4)                         # headroom for f32 matmul temps
        budget = vmem_limit // 2 - resident
        max_rows_per_tile = int(max(1024, budget // max(per_px, 1)))

    # row tile: tile_h output rows per grid step; sublane granule is 16 rows for
    # 16-bit storage (bf16 packs two rows per sublane), 8 for f32.
    sub = 16 if min(act_b, out_b) < 4 else 8
    cands = [d for d in range(1, H + 1)
             if H % d == 0 and (d * W) % sub == 0 and d * W <= max_rows_per_tile]
    tile_h = max(cands) if cands else H                  # full-dim block is always legal
    num_th = H // tile_h

    def const_spec(shape):
        zeros = (0,) * len(shape)
        return pl.BlockSpec(shape, lambda n, t, *_, _z=zeros: _z)

    grid_spec = pltpu.PrefetchScalarGridSpec(
        num_scalar_prefetch=3,
        grid=(N, num_th),
        in_specs=[
            # low-res features: resident per image (same block across row tiles)
            pl.BlockSpec((None, h * w, c_lo), lambda n, t, *_: (n, 0, 0)),
            # high-res features: one row tile per grid step
            pl.BlockSpec((None, tile_h * W, c_hi), lambda n, t, *_: (n, t, 0)),
            const_spec((W, w)),
            const_spec((c_lo, cop)), const_spec((1, cop)),
            const_spec((cop, cop)),
            const_spec((c_hi, cop)),
            const_spec((1, cop)),
        ],
        out_specs=pl.BlockSpec((None, tile_h * W, cop), lambda n, t, *_: (n, t, 0)),
        scratch_shapes=[
            pltpu.VMEM((h * W, cop), compute_dtype),       # conv'd + width-interp'd low-res
            pltpu.VMEM((tile_h * W, cop), compute_dtype),  # per-tile upsampled+ReLU activ.
        ],
    )

    # TODO(synk): for v7x at small batch, hoist the th==0 low-res precompute into a
    # separate small pallas_call so the row axis can also be "parallel" across both
    # TensorCores (the zw scratch reuse currently requires "arbitrary" on that axis).
    out_flat = pl.pallas_call(
        _make_ffm_kernel(h, w, W, tile_h),
        out_shape=jax.ShapeDtypeStruct((N, H * W, cop), out_dtype),
        grid_spec=grid_spec,
        compiler_params=pltpu.CompilerParams(
            dimension_semantics=("parallel", "arbitrary"),
            vmem_limit_bytes=int(vmem_limit)),
    )(h_i0, h_i1, h_f,
      lo_flat, hi_flat, aw, w1, b1, w2, w3, b23)

    out = out_flat[:, :, :c_out].reshape(N, H, W, c_out)
    return jnp.transpose(out, (0, 3, 1, 2))                    # back to NCHW


# ---------------------------------------------------------------------------
# deterministic parameter construction (conv has no bias; BN uses eval stats)
# ---------------------------------------------------------------------------
def make_raw_params(key, higher_in, lower_in, out_channels):
    keys = jax.random.split(key, 15)
    eps = 1e-5

    def conv_bn(ks, cin, cout):
        kw, kg, kb, km, kv = ks
        return dict(
            W=jax.random.normal(kw, (cout, cin), jnp.float32) / np.sqrt(cin),
            gamma=jax.random.uniform(kg, (cout,), jnp.float32, minval=0.5, maxval=1.5),
            beta=jax.random.normal(kb, (cout,), jnp.float32) * 0.1,
            mean=jax.random.normal(km, (cout,), jnp.float32) * 0.1,
            var=jax.random.uniform(kv, (cout,), jnp.float32, minval=0.5, maxval=1.5),
            eps=eps,
        )

    return dict(
        dwconv=conv_bn(keys[0:5], lower_in, out_channels),
        conv_lower_res=conv_bn(keys[5:10], out_channels, out_channels),
        conv_higher_res=conv_bn(keys[10:15], higher_in, out_channels),
    )


def fold_all(raw):
    def fold(cb):
        scale = cb["gamma"] / jnp.sqrt(cb["var"] + cb["eps"])
        Wf = (cb["W"] * scale[:, None]).T                 # (cin, cout)
        bf = (cb["beta"] - cb["mean"] * scale)[None, :]   # (1, cout)
        return Wf, bf

    w1, b1 = fold(raw["dwconv"])
    w2, b2 = fold(raw["conv_lower_res"])
    w3, b3 = fold(raw["conv_higher_res"])
    return dict(w1=w1, b1=b1, w2=w2, b2=b2, w3=w3, b3=b3)


# ---------------------------------------------------------------------------
# plain-JAX reference (original op order: resize -> convs -> add -> relu)
# ---------------------------------------------------------------------------
def reference(higher_nchw, lower_nchw, raw):
    _, _, H, W = higher_nchw.shape
    _, _, h, w = lower_nchw.shape
    Ah = jnp.asarray(bilinear_matrix(H, h))
    Aw = jnp.asarray(bilinear_matrix(W, w))
    P = jax.lax.Precision.HIGHEST

    lo = jnp.einsum("Hh,nchw->ncHw", Ah, lower_nchw, precision=P)
    lo = jnp.einsum("Ww,ncHw->ncHW", Aw, lo, precision=P)

    def conv_bn(x, cb, act):
        y = jnp.einsum("oc,nchw->nohw", cb["W"], x, precision=P)
        s = cb["gamma"] / jnp.sqrt(cb["var"] + cb["eps"])
        y = y * s[None, :, None, None] + (cb["beta"] - cb["mean"] * s)[None, :, None, None]
        return jax.nn.relu(y) if act else y

    lo = conv_bn(lo, raw["dwconv"], True)
    lo = conv_bn(lo, raw["conv_lower_res"], False)
    hi = conv_bn(higher_nchw, raw["conv_higher_res"], False)
    return jax.nn.relu(lo + hi)


if __name__ == "__main__":
    key = jax.random.PRNGKey(0)
    k_hi, k_lo, k_p = jax.random.split(key, 3)

    N, C_hi, H, W = 2, 4, 16, 16        # higher-resolution branch (NCHW)
    C_lo, h, w = 8, 8, 8                # lower-resolution branch (NCHW)
    C_out = 8

    higher = jax.random.normal(k_hi, (N, C_hi, H, W), jnp.float32)
    lower = jax.random.normal(k_lo, (N, C_lo, h, w), jnp.float32)

    raw = make_raw_params(k_p, C_hi, C_lo, C_out)
    params = fold_all(raw)
    ref = reference(higher, lower, raw)

    # f32 storage + f32 output, tight tolerance; max_rows_per_tile=128 forces a
    # 2-tile row grid at this toy size so the multi-tile (scratch-reuse) path is
    # exercised.
    out_f32 = feature_fusion(higher, lower, params,
                             max_rows_per_tile=128,
                             compute_dtype=jnp.float32,
                             out_dtype=jnp.float32)
    out_f32 = jax.block_until_ready(out_f32)
    assert out_f32.shape == (N, C_out, H, W)
    np.testing.assert_allclose(np.asarray(out_f32), np.asarray(ref),
                               rtol=2e-3, atol=2e-3)

    # production path: bf16 activations/weights/scratch/output, f32 MXU accum,
    # auto-derived (VMEM-budget) row tile.  Looser tolerance only from bf16
    # rounding.
    out_bf16 = feature_fusion(higher, lower, params,
                              compute_dtype=jnp.bfloat16)
    out_bf16 = jax.block_until_ready(out_bf16)
    assert out_bf16.shape == (N, C_out, H, W)
    np.testing.assert_allclose(np.asarray(out_bf16.astype(jnp.float32)),
                               np.asarray(ref), rtol=8e-2, atol=1.5e-1)

    print("KERNEL_OK")
</pallas_src>

<mosaic_0001>
module attributes {stable_mosaic.version = 11 : i64} {
  func.func @kernel(%arg0: i32, %arg1: i32, %arg2: memref<16xi32, #tpu.memory_space<smem>>, %arg3: memref<16xi32, #tpu.memory_space<smem>>, %arg4: memref<16xf32, #tpu.memory_space<smem>>, %arg5: memref<1x64x8xf32, #tpu.memory_space<vmem>>, %arg6: memref<1x128x4xf32, #tpu.memory_space<vmem>>, %arg7: memref<16x8xf32, #tpu.memory_space<vmem>>, %arg8: memref<8x128xf32, #tpu.memory_space<vmem>>, %arg9: memref<1x128xf32, #tpu.memory_space<vmem>>, %arg10: memref<128x128xf32, #tpu.memory_space<vmem>>, %arg11: memref<4x128xf32, #tpu.memory_space<vmem>>, %arg12: memref<1x128xf32, #tpu.memory_space<vmem>>, %arg13: memref<1x128x128xf32, #tpu.memory_space<vmem>>, %arg14: memref<128x128xf32, #tpu.memory_space<vmem>>, %arg15: memref<128x128xf32, #tpu.memory_space<vmem>>) attributes {dimension_semantics = [#tpu.dimension_semantics<parallel>, #tpu.dimension_semantics<arbitrary>], iteration_bounds = array<i64: 2, 2>, scalar_prefetch = 3 : i64, scratch_operands = 2 : i64, tpu.core_type = #tpu.core_type<tc>, window_params = [{transform_indices = @transform_0, window_bounds = array<i64: 1, 64, 8>}, {transform_indices = @transform_1, window_bounds = array<i64: 1, 128, 4>}, {pipeline_mode = #tpu.pipeline_mode<synchronous>, transform_indices = @transform_2, window_bounds = array<i64: 16, 8>}, {pipeline_mode = #tpu.pipeline_mode<synchronous>, transform_indices = @transform_3, window_bounds = array<i64: 8, 128>}, {pipeline_mode = #tpu.pipeline_mode<synchronous>, transform_indices = @transform_4, window_bounds = array<i64: 1, 128>}, {pipeline_mode = #tpu.pipeline_mode<synchronous>, transform_indices = @transform_5, window_bounds = array<i64: 128, 128>}, {pipeline_mode = #tpu.pipeline_mode<synchronous>, transform_indices = @transform_6, window_bounds = array<i64: 4, 128>}, {pipeline_mode = #tpu.pipeline_mode<synchronous>, transform_indices = @transform_7, window_bounds = array<i64: 1, 128>}, {transform_indices = @transform_8, window_bounds = array<i64: 1, 128, 128>}]} {
    %c0_i32 = arith.constant 0 : i32
    %0 = arith.cmpi eq, %arg1, %c0_i32 : i32
    %1 = arith.extui %0 : i1 to i32
    %c0_i32_0 = arith.constant 0 : i32
    %2 = arith.cmpi ne, %1, %c0_i32_0 : i32
    scf.if %2 {
      %c0_80 = arith.constant 0 : index
      %c0_81 = arith.constant 0 : index
      %c0_82 = arith.constant 0 : index
      %227 = vector.load %arg5[%c0_80, %c0_81, %c0_82] : memref<1x64x8xf32, #tpu.memory_space<vmem>>, vector<1x64x8xf32>
      %228 = vector.shape_cast %227 : vector<1x64x8xf32> to vector<64x8xf32>
      %c0_83 = arith.constant 0 : index
      %c0_84 = arith.constant 0 : index
      %229 = vector.load %arg8[%c0_83, %c0_84] : memref<8x128xf32, #tpu.memory_space<vmem>>, vector<8x128xf32>
      %cst_85 = arith.constant dense<0.000000e+00> : vector<64x128xf32>
      %230 = tpu.matmul %228, %229, %cst_85 {dimension_numbers = #tpu.dot_dimension_numbers<[1], [0], [0], [1], [0, 0, 1, 1], [], []>} : vector<64x8xf32>, vector<8x128xf32>, vector<64x128xf32> -> vector<64x128xf32>
      %c0_86 = arith.constant 0 : index
      %c0_87 = arith.constant 0 : index
      %231 = vector.load %arg9[%c0_86, %c0_87] : memref<1x128xf32, #tpu.memory_space<vmem>>, vector<1x128xf32>
      %232 = vector.broadcast %231 : vector<1x128xf32> to vector<64x128xf32>
      %233 = arith.addf %230, %232 : vector<64x128xf32>
      %c0_88 = arith.constant 0 : index
      %c0_89 = arith.constant 0 : index
      %234 = vector.load %arg7[%c0_88, %c0_89] : memref<16x8xf32, #tpu.memory_space<vmem>>, vector<16x8xf32>
      %235 = vector.extract_strided_slice %233 {offsets = [0, 0], sizes = [8, 128], strides = [1, 1]} : vector<64x128xf32> to vector<8x128xf32>
      %cst_90 = arith.constant dense<0.000000e+00> : vector<16x128xf32>
      %236 = tpu.matmul %234, %235, %cst_90 {dimension_numbers = #tpu.dot_dimension_numbers<[1], [0], [0], [1], [0, 0, 1, 1], [], []>} : vector<16x8xf32>, vector<8x128xf32>, vector<16x128xf32> -> vector<16x128xf32>
      %c0_91 = arith.constant 0 : index
      %c0_92 = arith.constant 0 : index
      %237 = vector.load %arg14[%c0_91, %c0_92] : memref<128x128xf32, #tpu.memory_space<vmem>>, vector<16x128xf32>
      tpu.vector_store %arg14[%c0_91, %c0_92], %236 {strides = array<i32>} : memref<128x128xf32, #tpu.memory_space<vmem>>, vector<16x128xf32>,
      %238 = vector.extract_strided_slice %233 {offsets = [8, 0], sizes = [8, 128], strides = [1, 1]} : vector<64x128xf32> to vector<8x128xf32>
      %cst_93 = arith.constant dense<0.000000e+00> : vector<16x128xf32>
      %239 = tpu.matmul %234, %238, %cst_93 {dimension_numbers = #tpu.dot_dimension_numbers<[1], [0], [0], [1], [0, 0, 1, 1], [], []>} : vector<16x8xf32>, vector<8x128xf32>, vector<16x128xf32> -> vector<16x128xf32>
      %c16 = arith.constant 16 : index
      %c0_94 = arith.constant 0 : index
      %240 = vector.load %arg14[%c16, %c0_94] : memref<128x128xf32, #tpu.memory_space<vmem>>, vector<16x128xf32>
      tpu.vector_store %arg14[%c16, %c0_94], %239 {strides = array<i32>} : memref<128x128xf32, #tpu.memory_space<vmem>>, vector<16x128xf32>,
      %241 = vector.extract_strided_slice %233 {offsets = [16, 0], sizes = [8, 128], strides = [1, 1]} : vector<64x128xf32> to vector<8x128xf32>
      %cst_95 = arith.constant dense<0.000000e+00> : vector<16x128xf32>
      %242 = tpu.matmul %234, %241, %cst_95 {dimension_numbers = #tpu.dot_dimension_numbers<[1], [0], [0], [1], [0, 0, 1, 1], [], []>} : vector<16x8xf32>, vector<8x128xf32>, vector<16x128xf32> -> vector<16x128xf32>
      %c32 = arith.constant 32 : index
      %c0_96 = arith.constant 0 : index
      %243 = vector.load %arg14[%c32, %c0_96] : memref<128x128xf32, #tpu.memory_space<vmem>>, vector<16x128xf32>
      tpu.vector_store %arg14[%c32, %c0_96], %242 {strides = array<i32>} : memref<128x128xf32, #tpu.memory_space<vmem>>, vector<16x128xf32>,
      %244 = vector.extract_strided_slice %233 {offsets = [24, 0], sizes = [8, 128], strides = [1, 1]} : vector<64x128xf32> to vector<8x128xf32>
      %cst_97 = arith.constant dense<0.000000e+00> : vector<16x128xf32>
      %245 = tpu.matmul %234, %244, %cst_97 {dimension_numbers = #tpu.dot_dimension_numbers<[1], [0], [0], [1], [0, 0, 1, 1], [], []>} : vector<16x8xf32>, vector<8x128xf32>, vector<16x128xf32> -> vector<16x128xf32>
      %c48 = arith.constant 48 : index
      %c0_98 = arith.constant 0 : index
      %246 = vector.load %arg14[%c48, %c0_98] : memref<128x128xf32, #tpu.memory_space<vmem>>, vector<16x128xf32>
      tpu.vector_store %arg14[%c48, %c0_98], %245 {strides = array<i32>} : memref<128x128xf32, #tpu.memory_space<vmem>>, vector<16x128xf32>,
      %247 = vector.extract_strided_slice %233 {offsets = [32, 0], sizes = [8, 128], strides = [1, 1]} : vector<64x128xf32> to vector<8x128xf32>
      %cst_99 = arith.constant dense<0.000000e+00> : vector<16x128xf32>
      %248 = tpu.matmul %234, %247, %cst_99 {dimension_numbers = #tpu.dot_dimension_numbers<[1], [0], [0], [1], [0, 0, 1, 1], [], []>} : vector<16x8xf32>, vector<8x128xf32>, vector<16x128xf32> -> vector<16x128xf32>
      %c64 = arith.constant 64 : index
      %c0_100 = arith.constant 0 : index
      %249 = vector.load %arg14[%c64, %c0_100] : memref<128x128xf32, #tpu.memory_space<vmem>>, vector<16x128xf32>
      tpu.vector_store %arg14[%c64, %c0_100], %248 {strides = array<i32>} : memref<128x128xf32, #tpu.memory_space<vmem>>, vector<16x128xf32>,
      %250 = vector.extract_strided_slice %233 {offsets = [40, 0], sizes = [8, 128], strides = [1, 1]} : vector<64x128xf32> to vector<8x128xf32>
      %cst_101 = arith.constant dense<0.000000e+00> : vector<16x128xf32>
      %251 = tpu.matmul %234, %250, %cst_101 {dimension_numbers = #tpu.dot_dimension_numbers<[1], [0], [0], [1], [0, 0, 1, 1], [], []>} : vector<16x8xf32>, vector<8x128xf32>, vector<16x128xf32> -> vector<16x128xf32>
      %c80 = arith.constant 80 : index
      %c0_102 = arith.constant 0 : index
      %252 = vector.load %arg14[%c80, %c0_102] : memref<128x128xf32, #tpu.memory_space<vmem>>, vector<16x128xf32>
      tpu.vector_store %arg14[%c80, %c0_102], %251 {strides = array<i32>} : memref<128x128xf32, #tpu.memory_space<vmem>>, vector<16x128xf32>,
      %253 = vector.extract_strided_slice %233 {offsets = [48, 0], sizes = [8, 128], strides = [1, 1]} : vector<64x128xf32> to vector<8x128xf32>
      %cst_103 = arith.constant dense<0.000000e+00> : vector<16x128xf32>
      %254 = tpu.matmul %234, %253, %cst_103 {dimension_numbers = #tpu.dot_dimension_numbers<[1], [0], [0], [1], [0, 0, 1, 1], [], []>} : vector<16x8xf32>, vector<8x128xf32>, vector<16x128xf32> -> vector<16x128xf32>
      %c96 = arith.constant 96 : index
      %c0_104 = arith.constant 0 : index
      %255 = vector.load %arg14[%c96, %c0_104] : memref<128x128xf32, #tpu.memory_space<vmem>>, vector<16x128xf32>
      tpu.vector_store %arg14[%c96, %c0_104], %254 {strides = array<i32>} : memref<128x128xf32, #tpu.memory_space<vmem>>, vector<16x128xf32>,
      %256 = vector.extract_strided_slice %233 {offsets = [56, 0], sizes = [8, 128], strides = [1, 1]} : vector<64x128xf32> to vector<8x128xf32>
      %cst_105 = arith.constant dense<0.000000e+00> : vector<16x128xf32>
      %257 = tpu.matmul %234, %256, %cst_105 {dimension_numbers = #tpu.dot_dimension_numbers<[1], [0], [0], [1], [0, 0, 1, 1], [], []>} : vector<16x8xf32>, vector<8x128xf32>, vector<16x128xf32> -> vector<16x128xf32>
      %c112 = arith.constant 112 : index
      %c0_106 = arith.constant 0 : index
      %258 = vector.load %arg14[%c112, %c0_106] : memref<128x128xf32, #tpu.memory_space<vmem>>, vector<16x128xf32>
      tpu.vector_store %arg14[%c112, %c0_106], %257 {strides = array<i32>} : memref<128x128xf32, #tpu.memory_space<vmem>>, vector<16x128xf32>,
    } else {
    }
    %c0_i32_1 = arith.constant 0 : i32
    %c8_i32 = arith.constant 8 : i32
    %3 = arith.muli %arg1, %c8_i32 : i32
    %4 = arith.addi %3, %c0_i32_1 : i32
    %5 = arith.index_cast %4 : i32 to index
    %6 = memref.load %arg2[%5] : memref<16xi32, #tpu.memory_space<smem>>
    %7 = arith.index_cast %4 : i32 to index
    %8 = memref.load %arg3[%7] : memref<16xi32, #tpu.memory_space<smem>>
    %9 = arith.index_cast %4 : i32 to index
    %10 = memref.load %arg4[%9] : memref<16xf32, #tpu.memory_space<smem>>
    %c16_i32 = arith.constant 16 : i32
    %11 = arith.muli %6, %c16_i32 : i32
    %12 = tpu.assume_multiple %11, 16 : i32
    %13 = arith.index_cast %12 : i32 to index
    %c0 = arith.constant 0 : index
    %14 = vector.load %arg14[%13, %c0] : memref<128x128xf32, #tpu.memory_space<vmem>>, vector<16x128xf32>
    %c16_i32_2 = arith.constant 16 : i32
    %15 = arith.muli %8, %c16_i32_2 : i32
    %16 = tpu.assume_multiple %15, 16 : i32
    %17 = arith.index_cast %16 : i32 to index
    %c0_3 = arith.constant 0 : index
    %18 = vector.load %arg14[%17, %c0_3] : memref<128x128xf32, #tpu.memory_space<vmem>>, vector<16x128xf32>
    %19 = arith.subf %18, %14 : vector<16x128xf32>
    %20 = vector.broadcast %10 : f32 to vector<16x128xf32>
    %21 = arith.mulf %20, %19 : vector<16x128xf32>
    %22 = arith.addf %14, %21 : vector<16x128xf32>
    %cst = arith.constant 0.000000e+00 : f32
    %23 = vector.broadcast %cst : f32 to vector<16x128xf32>
    %24 = arith.maximumf %22, %23 : vector<16x128xf32>
    %c16_i32_4 = arith.constant 16 : i32
    %25 = arith.muli %c0_i32_1, %c16_i32_4 : i32
    %26 = tpu.assume_multiple %25, 16 : i32
    %27 = arith.index_cast %26 : i32 to index
    %c0_5 = arith.constant 0 : index
    %28 = vector.load %arg15[%27, %c0_5] : memref<128x128xf32, #tpu.memory_space<vmem>>, vector<16x128xf32>
    tpu.vector_store %arg15[%27, %c0_5], %24 {strides = array<i32>} : memref<128x128xf32, #tpu.memory_space<vmem>>, vector<16x128xf32>,
    %c1_i32 = arith.constant 1 : i32
    %c8_i32_6 = arith.constant 8 : i32
    %29 = arith.muli %arg1, %c8_i32_6 : i32
    %30 = arith.addi %29, %c1_i32 : i32
    %31 = arith.index_cast %30 : i32 to index
    %32 = memref.load %arg2[%31] : memref<16xi32, #tpu.memory_space<smem>>
    %33 = arith.index_cast %30 : i32 to index
    %34 = memref.load %arg3[%33] : memref<16xi32, #tpu.memory_space<smem>>
    %35 = arith.index_cast %30 : i32 to index
    %36 = memref.load %arg4[%35] : memref<16xf32, #tpu.memory_space<smem>>
    %c16_i32_7 = arith.constant 16 : i32
    %37 = arith.muli %32, %c16_i32_7 : i32
    %38 = tpu.assume_multiple %37, 16 : i32
    %39 = arith.index_cast %38 : i32 to index
    %c0_8 = arith.constant 0 : index
    %40 = vector.load %arg14[%39, %c0_8] : memref<128x128xf32, #tpu.memory_space<vmem>>, vector<16x128xf32>
    %c16_i32_9 = arith.constant 16 : i32
    %41 = arith.muli %34, %c16_i32_9 : i32
    %42 = tpu.assume_multiple %41, 16 : i32
    %43 = arith.index_cast %42 : i32 to index
    %c0_10 = arith.constant 0 : index
    %44 = vector.load %arg14[%43, %c0_10] : memref<128x128xf32, #tpu.memory_space<vmem>>, vector<16x128xf32>
    %45 = arith.subf %44, %40 : vector<16x128xf32>
    %46 = vector.broadcast %36 : f32 to vector<16x128xf32>
    %47 = arith.mulf %46, %45 : vector<16x128xf32>
    %48 = arith.addf %40, %47 : vector<16x128xf32>
    %cst_11 = arith.constant 0.000000e+00 : f32
    %49 = vector.broadcast %cst_11 : f32 to vector<16x128xf32>
    %50 = arith.maximumf %48, %49 : vector<16x128xf32>
    %c16_i32_12 = arith.constant 16 : i32
    %51 = arith.muli %c1_i32, %c16_i32_12 : i32
    %52 = tpu.assume_multiple %51, 16 : i32
    %53 = arith.index_cast %52 : i32 to index
    %c0_13 = arith.constant 0 : index
    %54 = vector.load %arg15[%53, %c0_13] : memref<128x128xf32, #tpu.memory_space<vmem>>, vector<16x128xf32>
    tpu.vector_store %arg15[%53, %c0_13], %50 {strides = array<i32>} : memref<128x128xf32, #tpu.memory_space<vmem>>, vector<16x128xf32>,
    %c2_i32 = arith.constant 2 : i32
    %c8_i32_14 = arith.constant 8 : i32
    %55 = arith.muli %arg1, %c8_i32_14 : i32
    %56 = arith.addi %55, %c2_i32 : i32
    %57 = arith.index_cast %56 : i32 to index
    %58 = memref.load %arg2[%57] : memref<16xi32, #tpu.memory_space<smem>>
    %59 = arith.index_cast %56 : i32 to index
    %60 = memref.load %arg3[%59] : memref<16xi32, #tpu.memory_space<smem>>
    %61 = arith.index_cast %56 : i32 to index
    %62 = memref.load %arg4[%61] : memref<16xf32, #tpu.memory_space<smem>>
    %c16_i32_15 = arith.constant 16 : i32
    %63 = arith.muli %58, %c16_i32_15 : i32
    %64 = tpu.assume_multiple %63, 16 : i32
    %65 = arith.index_cast %64 : i32 to index
    %c0_16 = arith.constant 0 : index
    %66 = vector.load %arg14[%65, %c0_16] : memref<128x128xf32, #tpu.memory_space<vmem>>, vector<16x128xf32>
    %c16_i32_17 = arith.constant 16 : i32
    %67 = arith.muli %60, %c16_i32_17 : i32
    %68 = tpu.assume_multiple %67, 16 : i32
    %69 = arith.index_cast %68 : i32 to index
    %c0_18 = arith.constant 0 : index
    %70 = vector.load %arg14[%69, %c0_18] : memref<128x128xf32, #tpu.memory_space<vmem>>, vector<16x128xf32>
    %71 = arith.subf %70, %66 : vector<16x128xf32>
    %72 = vector.broadcast %62 : f32 to vector<16x128xf32>
    %73 = arith.mulf %72, %71 : vector<16x128xf32>
    %74 = arith.addf %66, %73 : vector<16x128xf32>
    %cst_19 = arith.constant 0.000000e+00 : f32
    %75 = vector.broadcast %cst_19 : f32 to vector<16x128xf32>
    %76 = arith.maximumf %74, %75 : vector<16x128xf32>
    %c16_i32_20 = arith.constant 16 : i32
    %77 = arith.muli %c2_i32, %c16_i32_20 : i32
    %78 = tpu.assume_multiple %77, 16 : i32
    %79 = arith.index_cast %78 : i32 to index
    %c0_21 = arith.constant 0 : index
    %80 = vector.load %arg15[%79, %c0_21] : memref<128x128xf32, #tpu.memory_space<vmem>>, vector<16x128xf32>
    tpu.vector_store %arg15[%79, %c0_21], %76 {strides = array<i32>} : memref<128x128xf32, #tpu.memory_space<vmem>>, vector<16x128xf32>,
    %c3_i32 = arith.constant 3 : i32
    %c8_i32_22 = arith.constant 8 : i32
    %81 = arith.muli %arg1, %c8_i32_22 : i32
    %82 = arith.addi %81, %c3_i32 : i32
    %83 = arith.index_cast %82 : i32 to index
    %84 = memref.load %arg2[%83] : memref<16xi32, #tpu.memory_space<smem>>
    %85 = arith.index_cast %82 : i32 to index
    %86 = memref.load %arg3[%85] : memref<16xi32, #tpu.memory_space<smem>>
    %87 = arith.index_cast %82 : i32 to index
    %88 = memref.load %arg4[%87] : memref<16xf32, #tpu.memory_space<smem>>
    %c16_i32_23 = arith.constant 16 : i32
    %89 = arith.muli %84, %c16_i32_23 : i32
    %90 = tpu.assume_multiple %89, 16 : i32
    %91 = arith.index_cast %90 : i32 to index
    %c0_24 = arith.constant 0 : index
    %92 = vector.load %arg14[%91, %c0_24] : memref<128x128xf32, #tpu.memory_space<vmem>>, vector<16x128xf32>
    %c16_i32_25 = arith.constant 16 : i32
    %93 = arith.muli %86, %c16_i32_25 : i32
    %94 = tpu.assume_multiple %93, 16 : i32
    %95 = arith.index_cast %94 : i32 to index
    %c0_26 = arith.constant 0 : index
    %96 = vector.load %arg14[%95, %c0_26] : memref<128x128xf32, #tpu.memory_space<vmem>>, vector<16x128xf32>
    %97 = arith.subf %96, %92 : vector<16x128xf32>
    %98 = vector.broadcast %88 : f32 to vector<16x128xf32>
    %99 = arith.mulf %98, %97 : vector<16x128xf32>
    %100 = arith.addf %92, %99 : vector<16x128xf32>
    %cst_27 = arith.constant 0.000000e+00 : f32
    %101 = vector.broadcast %cst_27 : f32 to vector<16x128xf32>
    %102 = arith.maximumf %100, %101 : vector<16x128xf32>
    %c16_i32_28 = arith.constant 16 : i32
    %103 = arith.muli %c3_i32, %c16_i32_28 : i32
    %104 = tpu.assume_multiple %103, 16 : i32
    %105 = arith.index_cast %104 : i32 to index
    %c0_29 = arith.constant 0 : index
    %106 = vector.load %arg15[%105, %c0_29] : memref<128x128xf32, #tpu.memory_space<vmem>>, vector<16x128xf32>
    tpu.vector_store %arg15[%105, %c0_29], %102 {strides = array<i32>} : memref<128x128xf32, #tpu.memory_space<vmem>>, vector<16x128xf32>,
    %c4_i32 = arith.constant 4 : i32
    %c8_i32_30 = arith.constant 8 : i32
    %107 = arith.muli %arg1, %c8_i32_30 : i32
    %108 = arith.addi %107, %c4_i32 : i32
    %109 = arith.index_cast %108 : i32 to index
    %110 = memref.load %arg2[%109] : memref<16xi32, #tpu.memory_space<smem>>
    %111 = arith.index_cast %108 : i32 to index
    %112 = memref.load %arg3[%111] : memref<16xi32, #tpu.memory_space<smem>>
    %113 = arith.index_cast %108 : i32 to index
    %114 = memref.load %arg4[%113] : memref<16xf32, #tpu.memory_space<smem>>
    %c16_i32_31 = arith.constant 16 : i32
    %115 = arith.muli %110, %c16_i32_31 : i32
    %116 = tpu.assume_multiple %115, 16 : i32
    %117 = arith.index_cast %116 : i32 to index
    %c0_32 = arith.constant 0 : index
    %118 = vector.load %arg14[%117, %c0_32] : memref<128x128xf32, #tpu.memory_space<vmem>>, vector<16x128xf32>
    %c16_i32_33 = arith.constant 16 : i32
    %119 = arith.muli %112, %c16_i32_33 : i32
    %120 = tpu.assume_multiple %119, 16 : i32
    %121 = arith.index_cast %120 : i32 to index
    %c0_34 = arith.constant 0 : index
    %122 = vector.load %arg14[%121, %c0_34] : memref<128x128xf32, #tpu.memory_space<vmem>>, vector<16x128xf32>
    %123 = arith.subf %122, %118 : vector<16x128xf32>
    %124 = vector.broadcast %114 : f32 to vector<16x128xf32>
    %125 = arith.mulf %124, %123 : vector<16x128xf32>
    %126 = arith.addf %118, %125 : vector<16x128xf32>
    %cst_35 = arith.constant 0.000000e+00 : f32
    %127 = vector.broadcast %cst_35 : f32 to vector<16x128xf32>
    %128 = arith.maximumf %126, %127 : vector<16x128xf32>
    %c16_i32_36 = arith.constant 16 : i32
    %129 = arith.muli %c4_i32, %c16_i32_36 : i32
    %130 = tpu.assume_multiple %129, 16 : i32
    %131 = arith.index_cast %130 : i32 to index
    %c0_37 = arith.constant 0 : index
    %132 = vector.load %arg15[%131, %c0_37] : memref<128x128xf32, #tpu.memory_space<vmem>>, vector<16x128xf32>
    tpu.vector_store %arg15[%131, %c0_37], %128 {strides = array<i32>} : memref<128x128xf32, #tpu.memory_space<vmem>>, vector<16x128xf32>,
    %c5_i32 = arith.constant 5 : i32
    %c8_i32_38 = arith.constant 8 : i32
    %133 = arith.muli %arg1, %c8_i32_38 : i32
    %134 = arith.addi %133, %c5_i32 : i32
    %135 = arith.index_cast %134 : i32 to index
    %136 = memref.load %arg2[%135] : memref<16xi32, #tpu.memory_space<smem>>
    %137 = arith.index_cast %134 : i32 to index
    %138 = memref.load %arg3[%137] : memref<16xi32, #tpu.memory_space<smem>>
    %139 = arith.index_cast %134 : i32 to index
    %140 = memref.load %arg4[%139] : memref<16xf32, #tpu.memory_space<smem>>
    %c16_i32_39 = arith.constant 16 : i32
    %141 = arith.muli %136, %c16_i32_39 : i32
    %142 = tpu.assume_multiple %141, 16 : i32
    %143 = arith.index_cast %142 : i32 to index
    %c0_40 = arith.constant 0 : index
    %144 = vector.load %arg14[%143, %c0_40] : memref<128x128xf32, #tpu.memory_space<vmem>>, vector<16x128xf32>
    %c16_i32_41 = arith.constant 16 : i32
    %145 = arith.muli %138, %c16_i32_41 : i32
    %146 = tpu.assume_multiple %145, 16 : i32
    %147 = arith.index_cast %146 : i32 to index
    %c0_42 = arith.constant 0 : index
    %148 = vector.load %arg14[%147, %c0_42] : memref<128x128xf32, #tpu.memory_space<vmem>>, vector<16x128xf32>
    %149 = arith.subf %148, %144 : vector<16x128xf32>
    %150 = vector.broadcast %140 : f32 to vector<16x128xf32>
    %151 = arith.mulf %150, %149 : vector<16x128xf32>
    %152 = arith.addf %144, %151 : vector<16x128xf32>
    %cst_43 = arith.constant 0.000000e+00 : f32
    %153 = vector.broadcast %cst_43 : f32 to vector<16x128xf32>
    %154 = arith.maximumf %152, %153 : vector<16x128xf32>
    %c16_i32_44 = arith.constant 16 : i32
    %155 = arith.muli %c5_i32, %c16_i32_44 : i32
    %156 = tpu.assume_multiple %155, 16 : i32
    %157 = arith.index_cast %156 : i32 to index
    %c0_45 = arith.constant 0 : index
    %158 = vector.load %arg15[%157, %c0_45] : memref<128x128xf32, #tpu.memory_space<vmem>>, vector<16x128xf32>
    tpu.vector_store %arg15[%157, %c0_45], %154 {strides = array<i32>} : memref<128x128xf32, #tpu.memory_space<vmem>>, vector<16x128xf32>,
    %c6_i32 = arith.constant 6 : i32
    %c8_i32_46 = arith.constant 8 : i32
    %159 = arith.muli %arg1, %c8_i32_46 : i32
    %160 = arith.addi %159, %c6_i32 : i32
    %161 = arith.index_cast %160 : i32 to index
    %162 = memref.load %arg2[%161] : memref<16xi32, #tpu.memory_space<smem>>
    %163 = arith.index_cast %160 : i32 to index
    %164 = memref.load %arg3[%163] : memref<16xi32, #tpu.memory_space<smem>>
    %165 = arith.index_cast %160 : i32 to index
    %166 = memref.load %arg4[%165] : memref<16xf32, #tpu.memory_space<smem>>
    %c16_i32_47 = arith.constant 16 : i32
    %167 = arith.muli %162, %c16_i32_47 : i32
    %168 = tpu.assume_multiple %167, 16 : i32
    %169 = arith.index_cast %168 : i32 to index
    %c0_48 = arith.constant 0 : index
    %170 = vector.load %arg14[%169, %c0_48] : memref<128x128xf32, #tpu.memory_space<vmem>>, vector<16x128xf32>
    %c16_i32_49 = arith.constant 16 : i32
    %171 = arith.muli %164, %c16_i32_49 : i32
    %172 = tpu.assume_multiple %171, 16 : i32
    %173 = arith.index_cast %172 : i32 to index
    %c0_50 = arith.constant 0 : index
    %174 = vector.load %arg14[%173, %c0_50] : memref<128x128xf32, #tpu.memory_space<vmem>>, vector<16x128xf32>
    %175 = arith.subf %174, %170 : vector<16x128xf32>
    %176 = vector.broadcast %166 : f32 to vector<16x128xf32>
    %177 = arith.mulf %176, %175 : vector<16x128xf32>
    %178 = arith.addf %170, %177 : vector<16x128xf32>
    %cst_51 = arith.constant 0.000000e+00 : f32
    %179 = vector.broadcast %cst_51 : f32 to vector<16x128xf32>
    %180 = arith.maximumf %178, %179 : vector<16x128xf32>
    %c16_i32_52 = arith.constant 16 : i32
    %181 = arith.muli %c6_i32, %c16_i32_52 : i32
    %182 = tpu.assume_multiple %181, 16 : i32
    %183 = arith.index_cast %182 : i32 to index
    %c0_53 = arith.constant 0 : index
    %184 = vector.load %arg15[%183, %c0_53] : memref<128x128xf32, #tpu.memory_space<vmem>>, vector<16x128xf32>
    tpu.vector_store %arg15[%183, %c0_53], %180 {strides = array<i32>} : memref<128x128xf32, #tpu.memory_space<vmem>>, vector<16x128xf32>,
    %c7_i32 = arith.constant 7 : i32
    %c8_i32_54 = arith.constant 8 : i32
    %185 = arith.muli %arg1, %c8_i32_54 : i32
    %186 = arith.addi %185, %c7_i32 : i32
    %187 = arith.index_cast %186 : i32 to index
    %188 = memref.load %arg2[%187] : memref<16xi32, #tpu.memory_space<smem>>
    %189 = arith.index_cast %186 : i32 to index
    %190 = memref.load %arg3[%189] : memref<16xi32, #tpu.memory_space<smem>>
    %191 = arith.index_cast %186 : i32 to index
    %192 = memref.load %arg4[%191] : memref<16xf32, #tpu.memory_space<smem>>
    %c16_i32_55 = arith.constant 16 : i32
    %193 = arith.muli %188, %c16_i32_55 : i32
    %194 = tpu.assume_multiple %193, 16 : i32
    %195 = arith.index_cast %194 : i32 to index
    %c0_56 = arith.constant 0 : index
    %196 = vector.load %arg14[%195, %c0_56] : memref<128x128xf32, #tpu.memory_space<vmem>>, vector<16x128xf32>
    %c16_i32_57 = arith.constant 16 : i32
    %197 = arith.muli %190, %c16_i32_57 : i32
    %198 = tpu.assume_multiple %197, 16 : i32
    %199 = arith.index_cast %198 : i32 to index
    %c0_58 = arith.constant 0 : index
    %200 = vector.load %arg14[%199, %c0_58] : memref<128x128xf32, #tpu.memory_space<vmem>>, vector<16x128xf32>
    %201 = arith.subf %200, %196 : vector<16x128xf32>
    %202 = vector.broadcast %192 : f32 to vector<16x128xf32>
    %203 = arith.mulf %202, %201 : vector<16x128xf32>
    %204 = arith.addf %196, %203 : vector<16x128xf32>
    %cst_59 = arith.constant 0.000000e+00 : f32
    %205 = vector.broadcast %cst_59 : f32 to vector<16x128xf32>
    %206 = arith.maximumf %204, %205 : vector<16x128xf32>
    %c16_i32_60 = arith.constant 16 : i32
    %207 = arith.muli %c7_i32, %c16_i32_60 : i32
    %208 = tpu.assume_multiple %207, 16 : i32
    %209 = arith.index_cast %208 : i32 to index
    %c0_61 = arith.constant 0 : index
    %210 = vector.load %arg15[%209, %c0_61] : memref<128x128xf32, #tpu.memory_space<vmem>>, vector<16x128xf32>
    tpu.vector_store %arg15[%209, %c0_61], %206 {strides = array<i32>} : memref<128x128xf32, #tpu.memory_space<vmem>>, vector<16x128xf32>,
    %c8_i32_62 = arith.constant 8 : i32
    %c0_63 = arith.constant 0 : index
    %c0_64 = arith.constant 0 : index
    %211 = vector.load %arg15[%c0_63, %c0_64] : memref<128x128xf32, #tpu.memory_space<vmem>>, vector<128x128xf32>
    %c0_65 = arith.constant 0 : index
    %c0_66 = arith.constant 0 : index
    %212 = vector.load %arg10[%c0_65, %c0_66] : memref<128x128xf32, #tpu.memory_space<vmem>>, vector<128x128xf32>
    %cst_67 = arith.constant dense<0.000000e+00> : vector<128x128xf32>
    %213 = tpu.matmul %211, %212, %cst_67 {dimension_numbers = #tpu.dot_dimension_numbers<[1], [0], [0], [1], [0, 0, 1, 1], [], []>} : vector<128x128xf32>, vector<128x128xf32>, vector<128x128xf32> -> vector<128x128xf32>
    %c0_68 = arith.constant 0 : index
    %c0_69 = arith.constant 0 : index
    %c0_70 = arith.constant 0 : index
    %214 = vector.load %arg6[%c0_68, %c0_69, %c0_70] : memref<1x128x4xf32, #tpu.memory_space<vmem>>, vector<1x128x4xf32>
    %215 = vector.shape_cast %214 : vector<1x128x4xf32> to vector<128x4xf32>
    %c0_71 = arith.constant 0 : index
    %c0_72 = arith.constant 0 : index
    %216 = vector.load %arg11[%c0_71, %c0_72] : memref<4x128xf32, #tpu.memory_space<vmem>>, vector<4x128xf32>
    %cst_73 = arith.constant dense<0.000000e+00> : vector<128x128xf32>
    %217 = tpu.matmul %215, %216, %cst_73 {dimension_numbers = #tpu.dot_dimension_numbers<[1], [0], [0], [1], [0, 0, 1, 1], [], []>} : vector<128x4xf32>, vector<4x128xf32>, vector<128x128xf32> -> vector<128x128xf32>
    %218 = arith.addf %213, %217 : vector<128x128xf32>
    %c0_74 = arith.constant 0 : index
    %c0_75 = arith.constant 0 : index
    %219 = vector.load %arg12[%c0_74, %c0_75] : memref<1x128xf32, #tpu.memory_space<vmem>>, vector<1x128xf32>
    %220 = vector.broadcast %219 : vector<1x128xf32> to vector<128x128xf32>
    %221 = arith.addf %218, %220 : vector<128x128xf32>
    %cst_76 = arith.constant 0.000000e+00 : f32
    %222 = vector.broadcast %cst_76 : f32 to vector<128x128xf32>
    %223 = arith.maximumf %221, %222 : vector<128x128xf32>
    %c0_77 = arith.constant 0 : index
    %c0_78 = arith.constant 0 : index
    %c0_79 = arith.constant 0 : index
    %224 = vector.load %arg13[%c0_77, %c0_78, %c0_79] : memref<1x128x128xf32, #tpu.memory_space<vmem>>, vector<1x128x128xf32>
    %225 = vector.shape_cast %224 : vector<1x128x128xf32> to vector<128x128xf32>
    %226 = vector.shape_cast %223 : vector<128x128xf32> to vector<1x128x128xf32>
    tpu.vector_store %arg13[%c0_77, %c0_78, %c0_79], %226 {strides = array<i32>} : memref<1x128x128xf32, #tpu.memory_space<vmem>>, vector<1x128x128xf32>,
    return
  }
  func.func @transform_0(%arg0: i32, %arg1: i32, %arg2: memref<16xi32, #tpu.memory_space<smem>>, %arg3: memref<16xi32, #tpu.memory_space<smem>>, %arg4: memref<16xf32, #tpu.memory_space<smem>>) -> (i32, i32, i32) {
    %c0_i32 = arith.constant 0 : i32
    %c0_i32_0 = arith.constant 0 : i32
    %c0_i32_1 = arith.constant 0 : i32
    return %arg0, %c0_i32, %c0_i32_0 : i32, i32, i32
  }
  func.func @transform_1(%arg0: i32, %arg1: i32, %arg2: memref<16xi32, #tpu.memory_space<smem>>, %arg3: memref<16xi32, #tpu.memory_space<smem>>, %arg4: memref<16xf32, #tpu.memory_space<smem>>) -> (i32, i32, i32) {
    %c0_i32 = arith.constant 0 : i32
    %c0_i32_0 = arith.constant 0 : i32
    return %arg0, %arg1, %c0_i32 : i32, i32, i32
  }
  func.func @transform_2(%arg0: i32, %arg1: i32, %arg2: memref<16xi32, #tpu.memory_space<smem>>, %arg3: memref<16xi32, #tpu.memory_space<smem>>, %arg4: memref<16xf32, #tpu.memory_space<smem>>) -> (i32, i32) {
    %c0_i32 = arith.constant 0 : i32
    %c0_i32_0 = arith.constant 0 : i32
    %c0_i32_1 = arith.constant 0 : i32
    return %c0_i32, %c0_i32_0 : i32, i32
  }
  func.func @transform_3(%arg0: i32, %arg1: i32, %arg2: memref<16xi32, #tpu.memory_space<smem>>, %arg3: memref<16xi32, #tpu.memory_space<smem>>, %arg4: memref<16xf32, #tpu.memory_space<smem>>) -> (i32, i32) {
    %c0_i32 = arith.constant 0 : i32
    %c0_i32_0 = arith.constant 0 : i32
    %c0_i32_1 = arith.constant 0 : i32
    return %c0_i32, %c0_i32_0 : i32, i32
  }
  func.func @transform_4(%arg0: i32, %arg1: i32, %arg2: memref<16xi32, #tpu.memory_space<smem>>, %arg3: memref<16xi32, #tpu.memory_space<smem>>, %arg4: memref<16xf32, #tpu.memory_space<smem>>) -> (i32, i32) {
    %c0_i32 = arith.constant 0 : i32
    %c0_i32_0 = arith.constant 0 : i32
    %c0_i32_1 = arith.constant 0 : i32
    return %c0_i32, %c0_i32_0 : i32, i32
  }
  func.func @transform_5(%arg0: i32, %arg1: i32, %arg2: memref<16xi32, #tpu.memory_space<smem>>, %arg3: memref<16xi32, #tpu.memory_space<smem>>, %arg4: memref<16xf32, #tpu.memory_space<smem>>) -> (i32, i32) {
    %c0_i32 = arith.constant 0 : i32
    %c0_i32_0 = arith.constant 0 : i32
    %c0_i32_1 = arith.constant 0 : i32
    return %c0_i32, %c0_i32_0 : i32, i32
  }
  func.func @transform_6(%arg0: i32, %arg1: i32, %arg2: memref<16xi32, #tpu.memory_space<smem>>, %arg3: memref<16xi32, #tpu.memory_space<smem>>, %arg4: memref<16xf32, #tpu.memory_space<smem>>) -> (i32, i32) {
    %c0_i32 = arith.constant 0 : i32
    %c0_i32_0 = arith.constant 0 : i32
    %c0_i32_1 = arith.constant 0 : i32
    return %c0_i32, %c0_i32_0 : i32, i32
  }
  func.func @transform_7(%arg0: i32, %arg1: i32, %arg2: memref<16xi32, #tpu.memory_space<smem>>, %arg3: memref<16xi32, #tpu.memory_space<smem>>, %arg4: memref<16xf32, #tpu.memory_space<smem>>) -> (i32, i32) {
    %c0_i32 = arith.constant 0 : i32
    %c0_i32_0 = arith.constant 0 : i32
    %c0_i32_1 = arith.constant 0 : i32
    return %c0_i32, %c0_i32_0 : i32, i32
  }
  func.func @transform_8(%arg0: i32, %arg1: i32, %arg2: memref<16xi32, #tpu.memory_space<smem>>, %arg3: memref<16xi32, #tpu.memory_space<smem>>, %arg4: memref<16xf32, #tpu.memory_space<smem>>) -> (i32, i32, i32) {
    %c0_i32 = arith.constant 0 : i32
    %c0_i32_0 = arith.constant 0 : i32
    return %arg0, %arg1, %c0_i32 : i32, i32, i32
  }
}

</mosaic_0001>

<llo_original>
// kernel: tpu_custom_call.1
$region0: #{tpu_custom_call.1}
  #allocation0 [shape = 'u32[]', space=smem, size = 0x4, offset = 0x4, fixed_abs, tag = 'smem constant byte address 0x4 - core index']
  #allocation1 [shape = 'u32[72,128]{1,0:T(1,128)}', space=vmem, size = 0x9000, scoped, tag = 'internal scratch']
  #allocation2 [shape = 'f32[128,128]{1,0:T(8,128)}', space=vmem, size = 0x10000, scoped, tag = 'scratch operand']
  #allocation3 [shape = 'f32[128,128]{1,0:T(8,128)}', space=vmem, size = 0x10000, scoped, tag = 'scratch operand']
  #allocation4 [shape = 's32[1]{0}', space=sflag, size = 0x4, scoped, tag = 'scoped memory for tpu_custom_call.1']
  #allocation5 [shape = 'u8[512]{0}', space=smem, size = 0x200, scoped, tag = 'prefetched SMEM operand 0']
  #allocation6 [shape = 'u8[512]{0}', space=smem, size = 0x200, scoped, tag = 'prefetched SMEM operand 1']
  #allocation7 [shape = 'u8[512]{0}', space=smem, size = 0x200, scoped, tag = 'prefetched SMEM operand 2']
  %s0 = inlined_call_operand.vmem [shape: s32[16], index: 0, kind: input, shape index: {}]
  %s1 = inlined_call_operand.vmem [shape: s32[16], index: 1, kind: input, shape index: {}]
  %s2 = inlined_call_operand.vmem [shape: f32[16], index: 2, kind: input, shape index: {}]
  %s3 = inlined_call_operand.vmem [shape: f32[2,64,8], index: 3, kind: input, shape index: {}]
  %s4 = inlined_call_operand.vmem [shape: f32[2,256,4], index: 4, kind: input, shape index: {}]
  %s5 = inlined_call_operand.vmem [shape: f32[16,8], index: 5, kind: input, shape index: {}]
  %s6 = inlined_call_operand.vmem [shape: f32[8,128], index: 6, kind: input, shape index: {}]
  %s7 = inlined_call_operand.vmem [shape: f32[1,128], index: 7, kind: input, shape index: {}]
  %s8 = inlined_call_operand.vmem [shape: f32[128,128], index: 8, kind: input, shape index: {}]
  %s9 = inlined_call_operand.vmem [shape: f32[4,128], index: 9, kind: input, shape index: {}]
  %s10 = inlined_call_operand.vmem [shape: f32[1,128], index: 10, kind: input, shape index: {}]
  %s11 = inlined_call_operand.hbm [shape: f32[2,256,128], index: 11, kind: output, shape index: {}]
  %s12 = sld [smem:[#allocation0]]
  $region69: #{tpu_custom_call.1} parent=0
    _
  %s14 = ssub.s32 1, %s12
  %s15 = scalar_select 0, %s14, %s12
  %s17 = sshll.u32 %s0, 4
  %s18 = int_to_ptr.vmem [resolvable:$true] %s17
  %20 = dma.vmem_to_smem %s18, 16, [#allocation5], [#allocation4]
  %s22 = sshll.u32 %s1, 4
  %s23 = int_to_ptr.vmem [resolvable:$true] %s22
  %25 = dma.vmem_to_smem %s23, 16, [#allocation6], [#allocation4]
  %s27 = sshll.u32 %s2, 4
  %s28 = int_to_ptr.vmem [resolvable:$true] %s27
  %30 = dma.vmem_to_smem %s28, 16, [#allocation7], [#allocation4]
  %32 = dma.done [#allocation4], 48
  %33 = sfence
  $region1: #{tpu_custom_call.1} parent=0
    #allocation8 [shape = 'u8[131072]{0}', space=vmem, size = 0x20000, scoped, tag = 'output window, operand 0']
    #allocation9 [shape = 's32[2]{0}', space=sflag, size = 0x8, scoped, tag = 'scoped memory for tpu_custom_call.1']
    %34 = vsyncpa [#allocation9], 0
    %s35 = scalar_lea.sflag [#allocation9], 1
    %36 = vsyncpa %s35, 0
    loop: start=0, step=1, limit=6
    $region2: #{tpu_custom_call.1} parent=1 // loop_pre_header
      _
    $region3: #{tpu_custom_call.1} parent=1 // loop_header
      %s38 = sphi 0, %s42
      %p39 = scmp.ge.s32.totalorder %s38, 6
      %s45 = sphi 0, %s57
      %s46 = sphi 0, %s53
      %s47 = sphi 0, %s45
      %s48 = sphi 0, %s46
      %s49 = sphi 0, %s47
      %s50 = sphi 0, %s48
      %s60 = sphi 0, %s62
      %s63 = sphi 0, %s60
      %s64 = sphi 0, %s63
      %s80 = sphi 0, %s64
      %s88 = sphi 0, %s90
      %s91 = sphi 0, %s88
      %s92 = sphi 0, %s91
      %s108 = sphi 0, %s92
      %s112 = sphi 0, %s112
      %s114 = sphi 0, %s112
      %s115 = sphi 0, %s114
      %s129 = sphi 0, %s115
      %s133 = sphi 0, %s133
      %s135 = sphi 0, %s133
      %s136 = sphi 0, %s135
      %s150 = sphi 0, %s136
      %s154 = sphi 0, %s154
      %s156 = sphi 0, %s154
      %s157 = sphi 0, %s156
      %s171 = sphi 0, %s157
      %s175 = sphi 0, %s175
      %s177 = sphi 0, %s175
      %s178 = sphi 0, %s177
      %s192 = sphi 0, %s178
      %s196 = sphi 0, %s196
      %s198 = sphi 0, %s196
      %s199 = sphi 0, %s198
      %s213 = sphi 0, %s199
      %s217 = sphi 0, %s217
      %s219 = sphi 0, %s217
      %s220 = sphi 0, %s219
      %s234 = sphi 0, %s220
      %s242 = sphi 0, %s244
      %s245 = sphi 0, %s242
      %s246 = sphi 0, %s245
      %s262 = sphi 0, %s246
    $region4: #{tpu_custom_call.1} parent=1 // loop_header_branch
      %41 = sbr.rel (%p39) target = $region8
    $region5: #{tpu_custom_call.1} parent=1 // loop_body
      %s43 = ssub.s32 %s38, 1
      %s44 = ssub.s32 %s38, 2
      %s51 = sadd.s32 1, %s46
      %p52 = scmp.ge.s32.totalorder %s51, 2
      %s53 = scalar_select %p52, 0, %s51
      %s54 = sadd.s32 1, %s45
      %s55 = scalar_select %p52, %s54, %s45
      %p56 = scmp.ge.s32.totalorder %s55, 2
      %s57 = scalar_select %p56, 0, %s55
      %s58 = ssub.s32 %s45, %s57
      %p59 = scmp.eq.s32.totalorder %s58, 0
      %s61 = sadd.s32 %s60, 1
      %s62 = scalar_select %p59, %s60, %s61
      %p65 = pneg %p59
      %p66 = scmp.eq.s32.totalorder %s38, 3
      %p67 = por %p65, %p66
      %p68 = scmp.ne.s32.totalorder %s60, %s63
      %p69 = scmp.eq.s32.totalorder %s38, 0
      %p70 = por %p68, %p69
      %p71 = scmp.ne.s32.totalorder %s60, %s63
      %p72 = scmp.eq.s32.totalorder %s43, 3
      %p73 = por %p71, %p72
      %p74 = scmp.ne.s32.totalorder %s63, %s64
      %p75 = scmp.eq.s32.totalorder %s43, 0
      %p76 = por %p74, %p75
      %p77 = scmp.ne.s32.totalorder %s63, %s64
      %p78 = scmp.eq.s32.totalorder %s44, 3
      %p79 = por %p77, %p78
      %p81 = scmp.ne.s32.totalorder %s64, %s80
      %p82 = scmp.eq.s32.totalorder %s44, 0
      %p83 = por %p81, %p82
      %s84 = ssub.s32 %s45, %s57
      %s85 = ssub.s32 %s46, %s53
      %s86 = sor.u32 %s84, %s85
      %p87 = scmp.eq.s32.totalorder %s86, 0
      %s89 = sadd.s32 %s88, 1
      %s90 = scalar_select %p87, %s88, %s89
      %p93 = pneg %p87
      %p94 = scmp.eq.s32.totalorder %s38, 3
      %p95 = por %p93, %p94
      %p96 = scmp.ne.s32.totalorder %s88, %s91
      %p97 = scmp.eq.s32.totalorder %s38, 0
      %p98 = por %p96, %p97
      %p99 = scmp.ne.s32.totalorder %s88, %s91
      %p100 = scmp.eq.s32.totalorder %s43, 3
      %p101 = por %p99, %p100
      %p102 = scmp.ne.s32.totalorder %s91, %s92
      %p103 = scmp.eq.s32.totalorder %s43, 0
      %p104 = por %p102, %p103
      %p105 = scmp.ne.s32.totalorder %s91, %s92
      %p106 = scmp.eq.s32.totalorder %s44, 3
      %p107 = por %p105, %p106
      %p109 = scmp.ne.s32.totalorder %s92, %s108
      %p110 = scmp.eq.s32.totalorder %s44, 0
      %p111 = por %p109, %p110
      %s113 = sadd.s32 %s112, 1
      %p116 = scmp.eq.s32.totalorder %s38, 3
      %p117 = scmp.ne.s32.totalorder %s112, %s114
      %p118 = scmp.eq.s32.totalorder %s38, 0
      %p119 = por %p117, %p118
      %p120 = scmp.ne.s32.totalorder %s112, %s114
      %p121 = scmp.eq.s32.totalorder %s43, 3
      %p122 = por %p120, %p121
      %p123 = scmp.ne.s32.totalorder %s114, %s115
      %p124 = scmp.eq.s32.totalorder %s43, 0
      %p125 = por %p123, %p124
      %p126 = scmp.ne.s32.totalorder %s114, %s115
      %p127 = scmp.eq.s32.totalorder %s44, 3
      %p128 = por %p126, %p127
      %p130 = scmp.ne.s32.totalorder %s115, %s129
      %p131 = scmp.eq.s32.totalorder %s44, 0
      %p132 = por %p130, %p131
      %s134 = sadd.s32 %s133, 1
      %p137 = scmp.eq.s32.totalorder %s38, 3
      %p138 = scmp.ne.s32.totalorder %s133, %s135
      %p139 = scmp.eq.s32.totalorder %s38, 0
      %p140 = por %p138, %p139
      %p141 = scmp.ne.s32.totalorder %s133, %s135
      %p142 = scmp.eq.s32.totalorder %s43, 3
      %p143 = por %p141, %p142
      %p144 = scmp.ne.s32.totalorder %s135, %s136
      %p145 = scmp.eq.s32.totalorder %s43, 0
      %p146 = por %p144, %p145
      %p147 = scmp.ne.s32.totalorder %s135, %s136
      %p148 = scmp.eq.s32.totalorder %s44, 3
      %p149 = por %p147, %p148
      %p151 = scmp.ne.s32.totalorder %s136, %s150
      %p152 = scmp.eq.s32.totalorder %s44, 0
      %p153 = por %p151, %p152
      %s155 = sadd.s32 %s154, 1
      %p158 = scmp.eq.s32.totalorder %s38, 3
      %p159 = scmp.ne.s32.totalorder %s154, %s156
      %p160 = scmp.eq.s32.totalorder %s38, 0
      %p161 = por %p159, %p160
      %p162 = scmp.ne.s32.totalorder %s154, %s156
      %p163 = scmp.eq.s32.totalorder %s43, 3
      %p164 = por %p162, %p163
      %p165 = scmp.ne.s32.totalorder %s156, %s157
      %p166 = scmp.eq.s32.totalorder %s43, 0
      %p167 = por %p165, %p166
      %p168 = scmp.ne.s32.totalorder %s156, %s157
      %p169 = scmp.eq.s32.totalorder %s44, 3
      %p170 = por %p168, %p169
      %p172 = scmp.ne.s32.totalorder %s157, %s171
      %p173 = scmp.eq.s32.totalorder %s44, 0
      %p174 = por %p172, %p173
      %s176 = sadd.s32 %s175, 1
      %p179 = scmp.eq.s32.totalorder %s38, 3
      %p180 = scmp.ne.s32.totalorder %s175, %s177
      %p181 = scmp.eq.s32.totalorder %s38, 0
      %p182 = por %p180, %p181
      %p183 = scmp.ne.s32.totalorder %s175, %s177
      %p184 = scmp.eq.s32.totalorder %s43, 3
      %p185 = por %p183, %p184
      %p186 = scmp.ne.s32.totalorder %s177, %s178
      %p187 = scmp.eq.s32.totalorder %s43, 0
      %p188 = por %p186, %p187
      %p189 = scmp.ne.s32.totalorder %s177, %s178
      %p190 = scmp.eq.s32.totalorder %s44, 3
      %p191 = por %p189, %p190
      %p193 = scmp.ne.s32.totalorder %s178, %s192
      %p194 = scmp.eq.s32.totalorder %s44, 0
      %p195 = por %p193, %p194
      %s197 = sadd.s32 %s196, 1
      %p200 = scmp.eq.s32.totalorder %s38, 3
      %p201 = scmp.ne.s32.totalorder %s196, %s198
      %p202 = scmp.eq.s32.totalorder %s38, 0
      %p203 = por %p201, %p202
      %p204 = scmp.ne.s32.totalorder %s196, %s198
      %p205 = scmp.eq.s32.totalorder %s43, 3
      %p206 = por %p204, %p205
      %p207 = scmp.ne.s32.totalorder %s198, %s199
      %p208 = scmp.eq.s32.totalorder %s43, 0
      %p209 = por %p207, %p208
      %p210 = scmp.ne.s32.totalorder %s198, %s199
      %p211 = scmp.eq.s32.totalorder %s44, 3
      %p212 = por %p210, %p211
      %p214 = scmp.ne.s32.totalorder %s199, %s213
      %p215 = scmp.eq.s32.totalorder %s44, 0
      %p216 = por %p214, %p215
      %s218 = sadd.s32 %s217, 1
      %p221 = scmp.eq.s32.totalorder %s38, 3
      %p222 = scmp.ne.s32.totalorder %s217, %s219
      %p223 = scmp.eq.s32.totalorder %s38, 0
      %p224 = por %p222, %p223
      %p225 = scmp.ne.s32.totalorder %s217, %s219
      %p226 = scmp.eq.s32.totalorder %s43, 3
      %p227 = por %p225, %p226
      %p228 = scmp.ne.s32.totalorder %s219, %s220
      %p229 = scmp.eq.s32.totalorder %s43, 0
      %p230 = por %p228, %p229
      %p231 = scmp.ne.s32.totalorder %s219, %s220
      %p232 = scmp.eq.s32.totalorder %s44, 3
      %p233 = por %p231, %p232
      %p235 = scmp.ne.s32.totalorder %s220, %s234
      %p236 = scmp.eq.s32.totalorder %s44, 0
      %p237 = por %p235, %p236
      %s238 = ssub.s32 %s45, %s57
      %s239 = ssub.s32 %s46, %s53
      %s240 = sor.u32 %s238, %s239
      %p241 = scmp.eq.s32.totalorder %s240, 0
      %s243 = sadd.s32 %s242, 1
      %s244 = scalar_select %p241, %s242, %s243
      %p247 = pneg %p241
      %p248 = scmp.eq.s32.totalorder %s38, 3
      %p249 = por %p247, %p248
      %p250 = scmp.ne.s32.totalorder %s242, %s245
      %p251 = scmp.eq.s32.totalorder %s38, 0
      %p252 = por %p250, %p251
      %p253 = scmp.ne.s32.totalorder %s242, %s245
      %p254 = scmp.eq.s32.totalorder %s43, 3
      %p255 = por %p253, %p254
      %p256 = scmp.ne.s32.totalorder %s245, %s246
      %p257 = scmp.eq.s32.totalorder %s43, 0
      %p258 = por %p256, %p257
      %p259 = scmp.ne.s32.totalorder %s245, %s246
      %p260 = scmp.eq.s32.totalorder %s44, 3
      %p261 = por %p259, %p260
      %p263 = scmp.ne.s32.totalorder %s246, %s262
      %p264 = scmp.eq.s32.totalorder %s44, 0
      %p265 = por %p263, %p264
      %p266 = scmp.le.s32.totalorder 1, %s38
      %p267 = scmp.lt.s32.totalorder %s38, 5
      %p268 = pnand %p266, %p267
      %p269 = pneg %p268
      // Predicated region
      $region9: #{tpu_custom_call.1} parent=5 // pred_check
        _
      $region10: #{tpu_custom_call.1} parent=5 // pred_check_branch
        %271 = sbr.rel (%p268) target = $region12
      $region11: #{tpu_custom_call.1} parent=5 // pred_region
        %s272 = ssub.s32 %s38, 1
        // Predicated region
        $region13: #{tpu_custom_call.1} parent=11 // pred_check
          %p273 = pneg %p125
        $region14: #{tpu_custom_call.1} parent=11 // pred_check_branch
          %275 = sbr.rel (%p273) target = $region16
        $region15: #{tpu_custom_call.1} parent=11 // pred_region
          _
        $region16: #{tpu_custom_call.1} parent=11 // pred_fallthru
          _
        // Predicated region
        $region17: #{tpu_custom_call.1} parent=11 // pred_check
          %p276 = pneg %p146
        $region18: #{tpu_custom_call.1} parent=11 // pred_check_branch
          %278 = sbr.rel (%p276) target = $region20
        $region19: #{tpu_custom_call.1} parent=11 // pred_region
          _
        $region20: #{tpu_custom_call.1} parent=11 // pred_fallthru
          _
        // Predicated region
        $region21: #{tpu_custom_call.1} parent=11 // pred_check
          %p279 = pneg %p167
        $region22: #{tpu_custom_call.1} parent=11 // pred_check_branch
          %281 = sbr.rel (%p279) target = $region24
        $region23: #{tpu_custom_call.1} parent=11 // pred_region
          _
        $region24: #{tpu_custom_call.1} parent=11 // pred_fallthru
          _
        // Predicated region
        $region25: #{tpu_custom_call.1} parent=11 // pred_check
          %p282 = pneg %p188
        $region26: #{tpu_custom_call.1} parent=11 // pred_check_branch
          %284 = sbr.rel (%p282) target = $region28
        $region27: #{tpu_custom_call.1} parent=11 // pred_region
          _
        $region28: #{tpu_custom_call.1} parent=11 // pred_fallthru
          _
        // Predicated region
        $region29: #{tpu_custom_call.1} parent=11 // pred_check
          %p285 = pneg %p209
        $region30: #{tpu_custom_call.1} parent=11 // pred_check_branch
          %287 = sbr.rel (%p285) target = $region32
        $region31: #{tpu_custom_call.1} parent=11 // pred_region
          _
        $region32: #{tpu_custom_call.1} parent=11 // pred_fallthru
          _
        // Predicated region
        $region33: #{tpu_custom_call.1} parent=11 // pred_check
          %p288 = pneg %p230
        $region34: #{tpu_custom_call.1} parent=11 // pred_check_branch
          %290 = sbr.rel (%p288) target = $region36
        $region35: #{tpu_custom_call.1} parent=11 // pred_region
          _
        $region36: #{tpu_custom_call.1} parent=11 // pred_fallthru
          _
      $region12: #{tpu_custom_call.1} parent=5 // pred_fallthru
        _
      %p291 = scmp.lt.s32.totalorder %s38, 4
      // Predicated region
      $region37: #{tpu_custom_call.1} parent=5 // pred_check
        %p292 = pneg %p291
      $region38: #{tpu_custom_call.1} parent=5 // pred_check_branch
        %294 = sbr.rel (%p292) target = $region40
      $region39: #{tpu_custom_call.1} parent=5 // pred_region
        // Predicated region
        $region41: #{tpu_custom_call.1} parent=39 // pred_check
          %p295 = pneg %p70
        $region42: #{tpu_custom_call.1} parent=39 // pred_check_branch
          %297 = sbr.rel (%p295) target = $region44
        $region43: #{tpu_custom_call.1} parent=39 // pred_region
          %p298 = scmp.lt.s32.totalorder %s45, 1
          %s299 = scalar_select %p298, %s45, 1
          %s300 = smul.addr %s299, 8
          %s301 = smul.addr %s300, 8
          %s302 = scalar_lea.vmem %s3, %s301
        $region44: #{tpu_custom_call.1} parent=39 // pred_fallthru
          _
        // Predicated region
        $region45: #{tpu_custom_call.1} parent=39 // pred_check
          %p303 = pneg %p98
        $region46: #{tpu_custom_call.1} parent=39 // pred_check_branch
          %305 = sbr.rel (%p303) target = $region48
        $region47: #{tpu_custom_call.1} parent=39 // pred_region
          %s306 = smul.u32 16, %s46
          %p307 = scmp.lt.s32.totalorder %s45, 1
          %s308 = scalar_select %p307, %s45, 1
          %p309 = scmp.lt.s32.totalorder %s306, 31
          %s310 = scalar_select %p309, %s306, 31
          %s311 = smul.addr %s308, 32
          %s312 = sadd.s32 %s310, %s311
          %s313 = smul.addr %s312, 8
          %s314 = scalar_lea.vmem %s4, %s313
          %s315 = smul.u32 16, %s46
        $region48: #{tpu_custom_call.1} parent=39 // pred_fallthru
          _
      $region40: #{tpu_custom_call.1} parent=5 // pred_fallthru
        _
      %p316 = scmp.le.s32.totalorder 1, %s38
      %p317 = scmp.lt.s32.totalorder %s38, 5
      %p318 = pnand %p316, %p317
      %p319 = pneg %p318
      // Predicated region
      $region49: #{tpu_custom_call.1} parent=5 // pred_check
        _
      $region50: #{tpu_custom_call.1} parent=5 // pred_check_branch
        %321 = sbr.rel (%p318) target = $region52
      $region51: #{tpu_custom_call.1} parent=5 // pred_region
        %s322 = ssub.s32 %s38, 1
        %p323 = scmp.lt.s32.totalorder %s47, 1
        %s324 = scalar_select %p323, %s47, 1
        %s325 = smul.addr %s324, 8
        %s326 = smul.addr %s325, 8
        %s327 = scalar_lea.vmem %s3, %s326
        %p328 = pneg %p76
        %p329 = pneg %p73
        %s330 = smul.u32 16, %s48
        %p331 = scmp.lt.s32.totalorder %s47, 1
        %s332 = scalar_select %p331, %s47, 1
        %p333 = scmp.lt.s32.totalorder %s330, 31
        %s334 = scalar_select %p333, %s330, 31
        %s335 = smul.addr %s332, 32
        %s336 = sadd.s32 %s334, %s335
        %s337 = smul.addr %s336, 8
        %s338 = scalar_lea.vmem %s4, %s337
        %p339 = pneg %p104
        %p340 = pneg %p101
        %p341 = pneg %p125
        %p342 = pneg %p122
        %p343 = pneg %p146
        %p344 = pneg %p143
        %p345 = pneg %p167
        %p346 = pneg %p164
        %p347 = pneg %p188
        %p348 = pneg %p185
        %p349 = pneg %p209
        %p350 = pneg %p206
        %p351 = pneg %p230
        %p352 = pneg %p227
        %p353 = pneg %p258
        %p354 = pneg %p255
        %s355 = sand.u32 %s245, 1
        %s356 = scalar_lea.sflag [#allocation9], %s355
        %s357 = sand.u32 %s245, 1
        %s358 = smul.addr %s357, 128
        %s359 = scalar_lea.vmem [#allocation8], %s358
        %p360 = scmp.lt.s32.totalorder %s47, 1
        %s361 = scalar_select %p360, %s47, 1
        %s362 = smul.addr %s361, 8
        %s363 = smul.addr %s362, 8
        %s364 = scalar_lea.vmem %s3, %s363
        %s365 = smul.u32 16, %s48
        %p366 = scmp.lt.s32.totalorder %s47, 1
        %s367 = scalar_select %p366, %s47, 1
        %p368 = scmp.lt.s32.totalorder %s365, 31
        %s369 = scalar_select %p368, %s365, 31
        %s370 = smul.addr %s367, 32
        %s371 = sadd.s32 %s369, %s370
        %s372 = smul.addr %s371, 8
        %s373 = scalar_lea.vmem %s4, %s372
        %s374 = smul.u32 16, %s48
        %s375 = smul.u32 16, %s48
        %p376 = scmp.eq.s32.totalorder %s48, 0
        // Predicated region
        $region53: #{tpu_custom_call.1} parent=51 // pred_check
          %p377 = pneg %p376
        $region54: #{tpu_custom_call.1} parent=51 // pred_check_branch
          %379 = sbr.rel (%p377) target = $region56
        $region55: #{tpu_custom_call.1} parent=51 // pred_region
          %v380 = vld [vmem:[%s364] sm:$0xff]
          %v381 = vld [vmem:[%s364 + $0x8] sm:$0xff]
          %v382 = vld [vmem:[%s364 + $0x10] sm:$0xff]
          %v383 = vld [vmem:[%s364 + $0x18] sm:$0xff]
          %v384 = vld [vmem:[%s364 + $0x20] sm:$0xff]
          %v385 = vld [vmem:[%s364 + $0x28] sm:$0xff]
          %v386 = vld [vmem:[%s364 + $0x30] sm:$0xff]
          %v387 = vld [vmem:[%s364 + $0x38] sm:$0xff]
          %v388 = vld [vmem:[%s6] sm:$0xff]
          %v389 = vld [vmem:[%s7] sm:$0x1]
          %v391 = vperm.slane %v389, 0
          %vm393 = vcmask 64512
          %v395 = vsel %vm393, %v380, 0
          %v398 = vsel %vm393, %v381, 0
          %v401 = vsel %vm393, %v382, 0
          %v404 = vsel %vm393, %v383, 0
          %v407 = vsel %vm393, %v384, 0
          %v410 = vsel %vm393, %v385, 0
          %v413 = vsel %vm393, %v386, 0
          %v416 = vsel %vm393, %v387, 0
          %418 = vmatpush.msra.mxu0 0.0
          %419 = vmatpush.msra.mxu0 0.0
          %420 = vmatpush.msra.mxu0 0.0
          %421 = vmatpush.msra.mxu0 0.0
          %422 = vmatpush.msra.mxu0 0.0
          %423 = vmatpush.msra.mxu0 0.0
          %424 = vmatpush.msra.mxu0 0.0
          %425 = vmatpush.msra.mxu0 0.0
          %426 = vmatpush.msra.mxu0 0.0
          %427 = vmatpush.msra.mxu0 0.0
          %428 = vmatpush.msra.mxu0 0.0
          %429 = vmatpush.msra.mxu0 0.0
          %430 = vmatpush.msra.mxu0 0.0
          %431 = vmatpush.msra.mxu0 0.0
          %432 = vmatpush.msra.mxu0 0.0
          %433 = vmatpush.msra.mxu0 %v388
          %434 = vmatmul.f32.gmra.mxu0 %v395
          %v435 = vpop.f32.mrf.mxu0
          %v436 = vadd.f32 %v391, %v435
          %437 = vmatmul.f32.gmra.mxu0 %v398
          %v438 = vpop.f32.mrf.mxu0
          %v439 = vadd.f32 %v391, %v438
          %440 = vmatmul.f32.gmra.mxu0 %v401
          %v441 = vpop.f32.mrf.mxu0
          %v442 = vadd.f32 %v391, %v441
          %443 = vmatmul.f32.gmra.mxu0 %v404
          %v444 = vpop.f32.mrf.mxu0
          %v445 = vadd.f32 %v391, %v444
          %446 = vmatmul.f32.gmra.mxu0 %v407
          %v447 = vpop.f32.mrf.mxu0
          %v448 = vadd.f32 %v391, %v447
          %449 = vmatmul.f32.gmra.mxu0 %v410
          %v450 = vpop.f32.mrf.mxu0
          %v451 = vadd.f32 %v391, %v450
          %452 = vmatmul.f32.gmra.mxu0 %v413
          %v453 = vpop.f32.mrf.mxu0
          %v454 = vadd.f32 %v391, %v453
          %455 = vmatmul.f32.gmra.mxu0 %v416
          %v456 = vpop.f32.mrf.mxu0
          %v457 = vadd.f32 %v391, %v456
          %458 = vdwg.mxu0
          %v459 = vld [vmem:[%s5] sm:$0xff]
          %v460 = vld [vmem:[%s5 + $0x8] sm:$0xff]
          %v462 = vsel %vm393, %v459, 0
          %v465 = vsel %vm393, %v460, 0
          %467 = vmatpush.msra.mxu0 0.0
          %468 = vmatpush.msra.mxu0 0.0
          %469 = vmatpush.msra.mxu0 0.0
          %470 = vmatpush.msra.mxu0 0.0
          %471 = vmatpush.msra.mxu0 0.0
          %472 = vmatpush.msra.mxu0 0.0
          %473 = vmatpush.msra.mxu0 0.0
          %474 = vmatpush.msra.mxu0 0.0
          %475 = vmatpush.msra.mxu0 0.0
          %476 = vmatpush.msra.mxu0 0.0
          %477 = vmatpush.msra.mxu0 0.0
          %478 = vmatpush.msra.mxu0 0.0
          %479 = vmatpush.msra.mxu0 0.0
          %480 = vmatpush.msra.mxu0 0.0
          %481 = vmatpush.msra.mxu0 0.0
          %482 = vmatpush.msra.mxu0 %v436
          %483 = vmatmul.f32.gmra.mxu0 %v462
          %v484 = vpop.f32.mrf.mxu0
          %v485 = vadd.f32 0.0, %v484
          %486 = vmatmul.f32.gmra.mxu0 %v465
          %v487 = vpop.f32.mrf.mxu0
          %v488 = vadd.f32 0.0, %v487
          %489 = vdwg.mxu0
          %490 = vst [vmem:[#allocation2] sm:$0xff] %v485
          %491 = vst [vmem:[#allocation2 + $0x8] sm:$0xff] %v488
          %492 = vmatpush.msra.mxu0 0.0
          %493 = vmatpush.msra.mxu0 0.0
          %494 = vmatpush.msra.mxu0 0.0
          %495 = vmatpush.msra.mxu0 0.0
          %496 = vmatpush.msra.mxu0 0.0
          %497 = vmatpush.msra.mxu0 0.0
          %498 = vmatpush.msra.mxu0 0.0
          %499 = vmatpush.msra.mxu0 0.0
          %500 = vmatpush.msra.mxu0 0.0
          %501 = vmatpush.msra.mxu0 0.0
          %502 = vmatpush.msra.mxu0 0.0
          %503 = vmatpush.msra.mxu0 0.0
          %504 = vmatpush.msra.mxu0 0.0
          %505 = vmatpush.msra.mxu0 0.0
          %506 = vmatpush.msra.mxu0 0.0
          %507 = vmatpush.msra.mxu0 %v439
          %508 = vmatmul.f32.gmra.mxu0 %v462
          %v509 = vpop.f32.mrf.mxu0
          %v510 = vadd.f32 0.0, %v509
          %511 = vmatmul.f32.gmra.mxu0 %v465
          %v512 = vpop.f32.mrf.mxu0
          %v513 = vadd.f32 0.0, %v512
          %514 = vdwg.mxu0
          %515 = vst [vmem:[#allocation2 + $0x10] sm:$0xff] %v510
          %516 = vst [vmem:[#allocation2 + $0x18] sm:$0xff] %v513
          %517 = vmatpush.msra.mxu0 0.0
          %518 = vmatpush.msra.mxu0 0.0
          %519 = vmatpush.msra.mxu0 0.0
          %520 = vmatpush.msra.mxu0 0.0
          %521 = vmatpush.msra.mxu0 0.0
          %522 = vmatpush.msra.mxu0 0.0
          %523 = vmatpush.msra.mxu0 0.0
          %524 = vmatpush.msra.mxu0 0.0
          %525 = vmatpush.msra.mxu0 0.0
          %526 = vmatpush.msra.mxu0 0.0
          %527 = vmatpush.msra.mxu0 0.0
          %528 = vmatpush.msra.mxu0 0.0
          %529 = vmatpush.msra.mxu0 0.0
          %530 = vmatpush.msra.mxu0 0.0
          %531 = vmatpush.msra.mxu0 0.0
          %532 = vmatpush.msra.mxu0 %v442
          %533 = vmatmul.f32.gmra.mxu0 %v462
          %v534 = vpop.f32.mrf.mxu0
          %v535 = vadd.f32 0.0, %v534
          %536 = vmatmul.f32.gmra.mxu0 %v465
          %v537 = vpop.f32.mrf.mxu0
          %v538 = vadd.f32 0.0, %v537
          %539 = vdwg.mxu0
          %540 = vst [vmem:[#allocation2 + $0x20] sm:$0xff] %v535
          %541 = vst [vmem:[#allocation2 + $0x28] sm:$0xff] %v538
          %542 = vmatpush.msra.mxu0 0.0
          %543 = vmatpush.msra.mxu0 0.0
          %544 = vmatpush.msra.mxu0 0.0
          %545 = vmatpush.msra.mxu0 0.0
          %546 = vmatpush.msra.mxu0 0.0
          %547 = vmatpush.msra.mxu0 0.0
          %548 = vmatpush.msra.mxu0 0.0
          %549 = vmatpush.msra.mxu0 0.0
          %550 = vmatpush.msra.mxu0 0.0
          %551 = vmatpush.msra.mxu0 0.0
          %552 = vmatpush.msra.mxu0 0.0
          %553 = vmatpush.msra.mxu0 0.0
          %554 = vmatpush.msra.mxu0 0.0
          %555 = vmatpush.msra.mxu0 0.0
          %556 = vmatpush.msra.mxu0 0.0
          %557 = vmatpush.msra.mxu0 %v445
          %558 = vmatmul.f32.gmra.mxu0 %v462
          %v559 = vpop.f32.mrf.mxu0
          %v560 = vadd.f32 0.0, %v559
          %561 = vmatmul.f32.gmra.mxu0 %v465
          %v562 = vpop.f32.mrf.mxu0
          %v563 = vadd.f32 0.0, %v562
          %564 = vdwg.mxu0
          %565 = vst [vmem:[#allocation2 + $0x30] sm:$0xff] %v560
          %566 = vst [vmem:[#allocation2 + $0x38] sm:$0xff] %v563
          %567 = vmatpush.msra.mxu0 0.0
          %568 = vmatpush.msra.mxu0 0.0
          %569 = vmatpush.msra.mxu0 0.0
          %570 = vmatpush.msra.mxu0 0.0
          %571 = vmatpush.msra.mxu0 0.0
          %572 = vmatpush.msra.mxu0 0.0
          %573 = vmatpush.msra.mxu0 0.0
          %574 = vmatpush.msra.mxu0 0.0
          %575 = vmatpush.msra.mxu0 0.0
          %576 = vmatpush.msra.mxu0 0.0
          %577 = vmatpush.msra.mxu0 0.0
          %578 = vmatpush.msra.mxu0 0.0
          %579 = vmatpush.msra.mxu0 0.0
          %580 = vmatpush.msra.mxu0 0.0
          %581 = vmatpush.msra.mxu0 0.0
          %582 = vmatpush.msra.mxu0 %v448
          %583 = vmatmul.f32.gmra.mxu0 %v462
          %v584 = vpop.f32.mrf.mxu0
          %v585 = vadd.f32 0.0, %v584
          %586 = vmatmul.f32.gmra.mxu0 %v465
          %v587 = vpop.f32.mrf.mxu0
          %v588 = vadd.f32 0.0, %v587
          %589 = vdwg.mxu0
          %590 = vst [vmem:[#allocation2 + $0x40] sm:$0xff] %v585
          %591 = vst [vmem:[#allocation2 + $0x48] sm:$0xff] %v588
          %592 = vmatpush.msra.mxu0 0.0
          %593 = vmatpush.msra.mxu0 0.0
          %594 = vmatpush.msra.mxu0 0.0
          %595 = vmatpush.msra.mxu0 0.0
          %596 = vmatpush.msra.mxu0 0.0
          %597 = vmatpush.msra.mxu0 0.0
          %598 = vmatpush.msra.mxu0 0.0
          %599 = vmatpush.msra.mxu0 0.0
          %600 = vmatpush.msra.mxu0 0.0
          %601 = vmatpush.msra.mxu0 0.0
          %602 = vmatpush.msra.mxu0 0.0
          %603 = vmatpush.msra.mxu0 0.0
          %604 = vmatpush.msra.mxu0 0.0
          %605 = vmatpush.msra.mxu0 0.0
          %606 = vmatpush.msra.mxu0 0.0
          %607 = vmatpush.msra.mxu0 %v451
          %608 = vmatmul.f32.gmra.mxu0 %v462
          %v609 = vpop.f32.mrf.mxu0
          %v610 = vadd.f32 0.0, %v609
          %611 = vmatmul.f32.gmra.mxu0 %v465
          %v612 = vpop.f32.mrf.mxu0
          %v613 = vadd.f32 0.0, %v612
          %614 = vdwg.mxu0
          %615 = vst [vmem:[#allocation2 + $0x50] sm:$0xff] %v610
          %616 = vst [vmem:[#allocation2 + $0x58] sm:$0xff] %v613
          %617 = vmatpush.msra.mxu0 0.0
          %618 = vmatpush.msra.mxu0 0.0
          %619 = vmatpush.msra.mxu0 0.0
          %620 = vmatpush.msra.mxu0 0.0
          %621 = vmatpush.msra.mxu0 0.0
          %622 = vmatpush.msra.mxu0 0.0
          %623 = vmatpush.msra.mxu0 0.0
          %624 = vmatpush.msra.mxu0 0.0
          %625 = vmatpush.msra.mxu0 0.0
          %626 = vmatpush.msra.mxu0 0.0
          %627 = vmatpush.msra.mxu0 0.0
          %628 = vmatpush.msra.mxu0 0.0
          %629 = vmatpush.msra.mxu0 0.0
          %630 = vmatpush.msra.mxu0 0.0
          %631 = vmatpush.msra.mxu0 0.0
          %632 = vmatpush.msra.mxu0 %v454
          %633 = vmatmul.f32.gmra.mxu0 %v462
          %v634 = vpop.f32.mrf.mxu0
          %v635 = vadd.f32 0.0, %v634
          %636 = vmatmul.f32.gmra.mxu0 %v465
          %v637 = vpop.f32.mrf.mxu0
          %v638 = vadd.f32 0.0, %v637
          %639 = vdwg.mxu0
          %640 = vst [vmem:[#allocation2 + $0x60] sm:$0xff] %v635
          %641 = vst [vmem:[#allocation2 + $0x68] sm:$0xff] %v638
          %642 = vmatpush.msra.mxu0 0.0
          %643 = vmatpush.msra.mxu0 0.0
          %644 = vmatpush.msra.mxu0 0.0
          %645 = vmatpush.msra.mxu0 0.0
          %646 = vmatpush.msra.mxu0 0.0
          %647 = vmatpush.msra.mxu0 0.0
          %648 = vmatpush.msra.mxu0 0.0
          %649 = vmatpush.msra.mxu0 0.0
          %650 = vmatpush.msra.mxu0 0.0
          %651 = vmatpush.msra.mxu0 0.0
          %652 = vmatpush.msra.mxu0 0.0
          %653 = vmatpush.msra.mxu0 0.0
          %654 = vmatpush.msra.mxu0 0.0
          %655 = vmatpush.msra.mxu0 0.0
          %656 = vmatpush.msra.mxu0 0.0
          %657 = vmatpush.msra.mxu0 %v457
          %658 = vmatmul.f32.gmra.mxu0 %v462
          %v659 = vpop.f32.mrf.mxu0
          %v660 = vadd.f32 0.0, %v659
          %661 = vmatmul.f32.gmra.mxu0 %v465
          %v662 = vpop.f32.mrf.mxu0
          %v663 = vadd.f32 0.0, %v662
          %664 = vdwg.mxu0
          %665 = vst [vmem:[#allocation2 + $0x70] sm:$0xff] %v660
          %666 = vst [vmem:[#allocation2 + $0x78] sm:$0xff] %v663
        $region56: #{tpu_custom_call.1} parent=51 // pred_fallthru
          _
        %s667 = smul.u32 %s48, 8
        %s668 = sld [smem:[#allocation5 + %s667]]
        %s669 = sld [smem:[#allocation6 + %s667]]
        %s670 = sld [smem:[#allocation7 + %s667]]
        %s671 = smul.u32 %s668, 16
        %s672 = scalar_lea.vmem [#allocation2], %s671
        %v673 = vld [vmem:[%s672] sm:$0xff]
        %v674 = vld [vmem:[%s672 + $0x8] sm:$0xff]
        %s675 = smul.u32 %s669, 16
        %s676 = scalar_lea.vmem [#allocation2], %s675
        %v677 = vld [vmem:[%s676] sm:$0xff]
        %v678 = vld [vmem:[%s676 + $0x8] sm:$0xff]
        %v679 = vsub.f32 %v677, %v673
        %v680 = vsub.f32 %v678, %v674
        %v681 = vstv %s670
        %v682 = vmul.f32 %v681, %v679
        %v683 = vmul.f32 %v681, %v680
        %v684 = vadd.f32 %v673, %v682
        %v685 = vadd.f32 %v674, %v683
        %v686 = vmax.f32 %v684, 0.0
        %v687 = vmax.f32 %v685, 0.0
        %688 = vst [vmem:[#allocation3] sm:$0xff] %v686
        %689 = vst [vmem:[#allocation3 + $0x8] sm:$0xff] %v687
        %s690 = sadd.s32 %s667, 1
        %s691 = sld [smem:[#allocation5 + %s690]]
        %s692 = sld [smem:[#allocation6 + %s690]]
        %s693 = sld [smem:[#allocation7 + %s690]]
        %s694 = smul.u32 %s691, 16
        %s695 = scalar_lea.vmem [#allocation2], %s694
        %v696 = vld [vmem:[%s695] sm:$0xff]
        %v697 = vld [vmem:[%s695 + $0x8] sm:$0xff]
        %s698 = smul.u32 %s692, 16
        %s699 = scalar_lea.vmem [#allocation2], %s698
        %v700 = vld [vmem:[%s699] sm:$0xff]
        %v701 = vld [vmem:[%s699 + $0x8] sm:$0xff]
        %v702 = vsub.f32 %v700, %v696
        %v703 = vsub.f32 %v701, %v697
        %v704 = vstv %s693
        %v705 = vmul.f32 %v704, %v702
        %v706 = vmul.f32 %v704, %v703
        %v707 = vadd.f32 %v696, %v705
        %v708 = vadd.f32 %v697, %v706
        %v709 = vmax.f32 %v707, 0.0
        %v710 = vmax.f32 %v708, 0.0
        %s711 = scalar_lea.vmem [#allocation3], 16
        %712 = vst [vmem:[%s711] sm:$0xff] %v709
        %713 = vst [vmem:[%s711 + $0x8] sm:$0xff] %v710
        %s714 = sadd.s32 %s667, 2
        %s715 = sld [smem:[#allocation5 + %s714]]
        %s716 = sld [smem:[#allocation6 + %s714]]
        %s717 = sld [smem:[#allocation7 + %s714]]
        %s718 = smul.u32 %s715, 16
        %s719 = scalar_lea.vmem [#allocation2], %s718
        %v720 = vld [vmem:[%s719] sm:$0xff]
        %v721 = vld [vmem:[%s719 + $0x8] sm:$0xff]
        %s722 = smul.u32 %s716, 16
        %s723 = scalar_lea.vmem [#allocation2], %s722
        %v724 = vld [vmem:[%s723] sm:$0xff]
        %v725 = vld [vmem:[%s723 + $0x8] sm:$0xff]
        %v726 = vsub.f32 %v724, %v720
        %v727 = vsub.f32 %v725, %v721
        %v728 = vstv %s717
        %v729 = vmul.f32 %v728, %v726
        %v730 = vmul.f32 %v728, %v727
        %v731 = vadd.f32 %v720, %v729
        %v732 = vadd.f32 %v721, %v730
        %v733 = vmax.f32 %v731, 0.0
        %v734 = vmax.f32 %v732, 0.0
        %s735 = scalar_lea.vmem [#allocation3], 32
        %736 = vst [vmem:[%s735] sm:$0xff] %v733
        %737 = vst [vmem:[%s735 + $0x8] sm:$0xff] %v734
        %s738 = sadd.s32 %s667, 3
        %s739 = sld [smem:[#allocation5 + %s738]]
        %s740 = sld [smem:[#allocation6 + %s738]]
        %s741 = sld [smem:[#allocation7 + %s738]]
        %s742 = smul.u32 %s739, 16
        %s743 = scalar_lea.vmem [#allocation2], %s742
        %v744 = vld [vmem:[%s743] sm:$0xff]
        %v745 = vld [vmem:[%s743 + $0x8] sm:$0xff]
        %s746 = smul.u32 %s740, 16
        %s747 = scalar_lea.vmem [#allocation2], %s746
        %v748 = vld [vmem:[%s747] sm:$0xff]
        %v749 = vld [vmem:[%s747 + $0x8] sm:$0xff]
        %v750 = vsub.f32 %v748, %v744
        %v751 = vsub.f32 %v749, %v745
        %v752 = vstv %s741
        %v753 = vmul.f32 %v752, %v750
        %v754 = vmul.f32 %v752, %v751
        %v755 = vadd.f32 %v744, %v753
        %v756 = vadd.f32 %v745, %v754
        %v757 = vmax.f32 %v755, 0.0
        %v758 = vmax.f32 %v756, 0.0
        %s759 = scalar_lea.vmem [#allocation3], 48
        %760 = vst [vmem:[%s759] sm:$0xff] %v757
        %761 = vst [vmem:[%s759 + $0x8] sm:$0xff] %v758
        %s762 = sadd.s32 %s667, 4
        %s763 = sld [smem:[#allocation5 + %s762]]
        %s764 = sld [smem:[#allocation6 + %s762]]
        %s765 = sld [smem:[#allocation7 + %s762]]
        %s766 = smul.u32 %s763, 16
        %s767 = scalar_lea.vmem [#allocation2], %s766
        %v768 = vld [vmem:[%s767] sm:$0xff]
        %v769 = vld [vmem:[%s767 + $0x8] sm:$0xff]
        %s770 = smul.u32 %s764, 16
        %s771 = scalar_lea.vmem [#allocation2], %s770
        %v772 = vld [vmem:[%s771] sm:$0xff]
        %v773 = vld [vmem:[%s771 + $0x8] sm:$0xff]
        %v774 = vsub.f32 %v772, %v768
        %v775 = vsub.f32 %v773, %v769
        %v776 = vstv %s765
        %v777 = vmul.f32 %v776, %v774
        %v778 = vmul.f32 %v776, %v775
        %v779 = vadd.f32 %v768, %v777
        %v780 = vadd.f32 %v769, %v778
        %v781 = vmax.f32 %v779, 0.0
        %v782 = vmax.f32 %v780, 0.0
        %s783 = scalar_lea.vmem [#allocation3], 64
        %784 = vst [vmem:[%s783] sm:$0xff] %v781
        %785 = vst [vmem:[%s783 + $0x8] sm:$0xff] %v782
        %s786 = sadd.s32 %s667, 5
        %s787 = sld [smem:[#allocation5 + %s786]]
        %s788 = sld [smem:[#allocation6 + %s786]]
        %s789 = sld [smem:[#allocation7 + %s786]]
        %s790 = smul.u32 %s787, 16
        %s791 = scalar_lea.vmem [#allocation2], %s790
        %v792 = vld [vmem:[%s791] sm:$0xff]
        %v793 = vld [vmem:[%s791 + $0x8] sm:$0xff]
        %s794 = smul.u32 %s788, 16
        %s795 = scalar_lea.vmem [#allocation2], %s794
        %v796 = vld [vmem:[%s795] sm:$0xff]
        %v797 = vld [vmem:[%s795 + $0x8] sm:$0xff]
        %v798 = vsub.f32 %v796, %v792
        %v799 = vsub.f32 %v797, %v793
        %v800 = vstv %s789
        %v801 = vmul.f32 %v800, %v798
        %v802 = vmul.f32 %v800, %v799
        %v803 = vadd.f32 %v792, %v801
        %v804 = vadd.f32 %v793, %v802
        %v805 = vmax.f32 %v803, 0.0
        %v806 = vmax.f32 %v804, 0.0
        %s807 = scalar_lea.vmem [#allocation3], 80
        %808 = vst [vmem:[%s807] sm:$0xff] %v805
        %809 = vst [vmem:[%s807 + $0x8] sm:$0xff] %v806
        %s810 = sadd.s32 %s667, 6
        %s811 = sld [smem:[#allocation5 + %s810]]
        %s812 = sld [smem:[#allocation6 + %s810]]
        %s813 = sld [smem:[#allocation7 + %s810]]
        %s814 = smul.u32 %s811, 16
        %s815 = scalar_lea.vmem [#allocation2], %s814
        %v816 = vld [vmem:[%s815] sm:$0xff]
        %v817 = vld [vmem:[%s815 + $0x8] sm:$0xff]
        %s818 = smul.u32 %s812, 16
        %s819 = scalar_lea.vmem [#allocation2], %s818
        %v820 = vld [vmem:[%s819] sm:$0xff]
        %v821 = vld [vmem:[%s819 + $0x8] sm:$0xff]
        %v822 = vsub.f32 %v820, %v816
        %v823 = vsub.f32 %v821, %v817
        %v824 = vstv %s813
        %v825 = vmul.f32 %v824, %v822
        %v826 = vmul.f32 %v824, %v823
        %v827 = vadd.f32 %v816, %v825
        %v828 = vadd.f32 %v817, %v826
        %v829 = vmax.f32 %v827, 0.0
        %v830 = vmax.f32 %v828, 0.0
        %s831 = scalar_lea.vmem [#allocation3], 96
        %832 = vst [vmem:[%s831] sm:$0xff] %v829
        %833 = vst [vmem:[%s831 + $0x8] sm:$0xff] %v830
        %s834 = sadd.s32 %s667, 7
        %s835 = sld [smem:[#allocation5 + %s834]]
        %s836 = sld [smem:[#allocation6 + %s834]]
        %s837 = sld [smem:[#allocation7 + %s834]]
        %s838 = smul.u32 %s835, 16
        %s839 = scalar_lea.vmem [#allocation2], %s838
        %v840 = vld [vmem:[%s839] sm:$0xff]
        %v841 = vld [vmem:[%s839 + $0x8] sm:$0xff]
        %s842 = smul.u32 %s836, 16
        %s843 = scalar_lea.vmem [#allocation2], %s842
        %v844 = vld [vmem:[%s843] sm:$0xff]
        %v845 = vld [vmem:[%s843 + $0x8] sm:$0xff]
        %v846 = vsub.f32 %v844, %v840
        %v847 = vsub.f32 %v845, %v841
        %v848 = vstv %s837
        %v849 = vmul.f32 %v848, %v846
        %v850 = vmul.f32 %v848, %v847
        %v851 = vadd.f32 %v840, %v849
        %v852 = vadd.f32 %v841, %v850
        %v853 = vmax.f32 %v851, 0.0
        %v854 = vmax.f32 %v852, 0.0
        %s855 = scalar_lea.vmem [#allocation3], 112
        %856 = vst [vmem:[%s855] sm:$0xff] %v853
        %857 = vst [vmem:[%s855 + $0x8] sm:$0xff] %v854
        %v858 = vld [vmem:[#allocation3] sm:$0xff]
        %v859 = vld [vmem:[#allocation3 + $0x8] sm:$0xff]
        %v860 = vld [vmem:[#allocation3 + $0x10] sm:$0xff]
        %v861 = vld [vmem:[#allocation3 + $0x18] sm:$0xff]
        %v862 = vld [vmem:[#allocation3 + $0x20] sm:$0xff]
        %v863 = vld [vmem:[#allocation3 + $0x28] sm:$0xff]
        %v864 = vld [vmem:[#allocation3 + $0x30] sm:$0xff]
        %v865 = vld [vmem:[#allocation3 + $0x38] sm:$0xff]
        %v866 = vld [vmem:[#allocation3 + $0x40] sm:$0xff]
        %v867 = vld [vmem:[#allocation3 + $0x48] sm:$0xff]
        %v868 = vld [vmem:[#allocation3 + $0x50] sm:$0xff]
        %v869 = vld [vmem:[#allocation3 + $0x58] sm:$0xff]
        %v870 = vld [vmem:[#allocation3 + $0x60] sm:$0xff]
        %v871 = vld [vmem:[#allocation3 + $0x68] sm:$0xff]
        %v872 = vld [vmem:[#allocation3 + $0x70] sm:$0xff]
        %v873 = vld [vmem:[#allocation3 + $0x78] sm:$0xff]
        %v874 = vld [vmem:[%s8] sm:$0xff]
        %v875 = vld [vmem:[%s8 + $0x8] sm:$0xff]
        %v876 = vld [vmem:[%s8 + $0x10] sm:$0xff]
        %v877 = vld [vmem:[%s8 + $0x18] sm:$0xff]
        %v878 = vld [vmem:[%s8 + $0x20] sm:$0xff]
        %v879 = vld [vmem:[%s8 + $0x28] sm:$0xff]
        %v880 = vld [vmem:[%s8 + $0x30] sm:$0xff]
        %v881 = vld [vmem:[%s8 + $0x38] sm:$0xff]
        %v882 = vld [vmem:[%s8 + $0x40] sm:$0xff]
        %v883 = vld [vmem:[%s8 + $0x48] sm:$0xff]
        %v884 = vld [vmem:[%s8 + $0x50] sm:$0xff]
        %v885 = vld [vmem:[%s8 + $0x58] sm:$0xff]
        %v886 = vld [vmem:[%s8 + $0x60] sm:$0xff]
        %v887 = vld [vmem:[%s8 + $0x68] sm:$0xff]
        %v888 = vld [vmem:[%s8 + $0x70] sm:$0xff]
        %v889 = vld [vmem:[%s8 + $0x78] sm:$0xff]
        %v890 = vld [vmem:[%s373] sm:$0xff]
        %v891 = vld [vmem:[%s373 + $0x8] sm:$0xff]
        %v892 = vld [vmem:[%s373 + $0x10] sm:$0xff]
        %v893 = vld [vmem:[%s373 + $0x18] sm:$0xff]
        %v894 = vld [vmem:[%s373 + $0x20] sm:$0xff]
        %v895 = vld [vmem:[%s373 + $0x28] sm:$0xff]
        %v896 = vld [vmem:[%s373 + $0x30] sm:$0xff]
        %v897 = vld [vmem:[%s373 + $0x38] sm:$0xff]
        %v898 = vld [vmem:[%s373 + $0x40] sm:$0xff]
        %v899 = vld [vmem:[%s373 + $0x48] sm:$0xff]
        %v900 = vld [vmem:[%s373 + $0x50] sm:$0xff]
        %v901 = vld [vmem:[%s373 + $0x58] sm:$0xff]
        %v902 = vld [vmem:[%s373 + $0x60] sm:$0xff]
        %v903 = vld [vmem:[%s373 + $0x68] sm:$0xff]
        %v904 = vld [vmem:[%s373 + $0x70] sm:$0xff]
        %v905 = vld [vmem:[%s373 + $0x78] sm:$0xff]
        %v906 = vld [vmem:[%s9] sm:$0xf]
        %vm907 = vcmask 31744
        %v909 = vsel %vm907, %v890, 0
        %v912 = vsel %vm907, %v891, 0
        %v915 = vsel %vm907, %v892, 0
        %v918 = vsel %vm907, %v893, 0
        %v921 = vsel %vm907, %v894, 0
        %v924 = vsel %vm907, %v895, 0
        %v927 = vsel %vm907, %v896, 0
        %v930 = vsel %vm907, %v897, 0
        %v933 = vsel %vm907, %v898, 0
        %v936 = vsel %vm907, %v899, 0
        %v939 = vsel %vm907, %v900, 0
        %v942 = vsel %vm907, %v901, 0
        %v945 = vsel %vm907, %v902, 0
        %v948 = vsel %vm907, %v903, 0
        %v951 = vsel %vm907, %v904, 0
        %v954 = vsel %vm907, %v905, 0
        %vm956 = vcmask 1043456
        %v958 = vsel %vm956, %v906, 0
        %960 = vmatpush.msra.mxu0 0.0
        %961 = vmatpush.msra.mxu0 0.0
        %962 = vmatpush.msra.mxu0 0.0
        %963 = vmatpush.msra.mxu0 0.0
        %964 = vmatpush.msra.mxu0 0.0
        %965 = vmatpush.msra.mxu0 0.0
        %966 = vmatpush.msra.mxu0 0.0
        %967 = vmatpush.msra.mxu0 0.0
        %968 = vmatpush.msra.mxu0 0.0
        %969 = vmatpush.msra.mxu0 0.0
        %970 = vmatpush.msra.mxu0 0.0
        %971 = vmatpush.msra.mxu0 0.0
        %972 = vmatpush.msra.mxu0 0.0
        %973 = vmatpush.msra.mxu0 0.0
        %974 = vmatpush.msra.mxu0 0.0
        %975 = vmatpush.msra.mxu0 %v958
        %976 = vmatmul.f32.gmra.mxu0 %v909
        %v977 = vpop.f32.mrf.mxu0
        %v978 = vadd.f32 0.0, %v977
        %979 = vmatmul.f32.gmra.mxu0 %v912
        %v980 = vpop.f32.mrf.mxu0
        %v981 = vadd.f32 0.0, %v980
        %982 = vmatmul.f32.gmra.mxu0 %v915
        %v983 = vpop.f32.mrf.mxu0
        %v984 = vadd.f32 0.0, %v983
        %985 = vmatmul.f32.gmra.mxu0 %v918
        %v986 = vpop.f32.mrf.mxu0
        %v987 = vadd.f32 0.0, %v986
        %988 = vmatmul.f32.gmra.mxu0 %v921
        %v989 = vpop.f32.mrf.mxu0
        %v990 = vadd.f32 0.0, %v989
        %991 = vmatmul.f32.gmra.mxu0 %v924
        %v992 = vpop.f32.mrf.mxu0
        %v993 = vadd.f32 0.0, %v992
        %994 = vmatmul.f32.gmra.mxu0 %v927
        %v995 = vpop.f32.mrf.mxu0
        %v996 = vadd.f32 0.0, %v995
        %997 = vmatmul.f32.gmra.mxu0 %v930
        %v998 = vpop.f32.mrf.mxu0
        %v999 = vadd.f32 0.0, %v998
        %1000 = vmatmul.f32.gmra.mxu0 %v933
        %v1001 = vpop.f32.mrf.mxu0
        %v1002 = vadd.f32 0.0, %v1001
        %1003 = vmatmul.f32.gmra.mxu0 %v936
        %v1004 = vpop.f32.mrf.mxu0
        %v1005 = vadd.f32 0.0, %v1004
        %1006 = vmatmul.f32.gmra.mxu0 %v939
        %v1007 = vpop.f32.mrf.mxu0
        %v1008 = vadd.f32 0.0, %v1007
        %1009 = vmatmul.f32.gmra.mxu0 %v942
        %v1010 = vpop.f32.mrf.mxu0
        %v1011 = vadd.f32 0.0, %v1010
        %1012 = vmatmul.f32.gmra.mxu0 %v945
        %v1013 = vpop.f32.mrf.mxu0
        %v1014 = vadd.f32 0.0, %v1013
        %1015 = vmatmul.f32.gmra.mxu0 %v948
        %v1016 = vpop.f32.mrf.mxu0
        %v1017 = vadd.f32 0.0, %v1016
        %1018 = vmatmul.f32.gmra.mxu0 %v951
        %v1019 = vpop.f32.mrf.mxu0
        %v1020 = vadd.f32 0.0, %v1019
        %1021 = vmatmul.f32.gmra.mxu0 %v954
        %v1022 = vpop.f32.mrf.mxu0
        %v1023 = vadd.f32 0.0, %v1022
        %1024 = vdwg.mxu0
        %1025 = vmatpush.msra.mxu0 %v889
        %1026 = vmatpush.msra.mxu0 %v888
        %1027 = vmatpush.msra.mxu0 %v887
        %1028 = vmatpush.msra.mxu0 %v886
        %1029 = vmatpush.msra.mxu0 %v885
        %1030 = vmatpush.msra.mxu0 %v884
        %1031 = vmatpush.msra.mxu0 %v883
        %1032 = vmatpush.msra.mxu0 %v882
        %1033 = vmatpush.msra.mxu0 %v881
        %1034 = vmatpush.msra.mxu0 %v880
        %1035 = vmatpush.msra.mxu0 %v879
        %1036 = vmatpush.msra.mxu0 %v878
        %1037 = vmatpush.msra.mxu0 %v877
        %1038 = vmatpush.msra.mxu0 %v876
        %1039 = vmatpush.msra.mxu0 %v875
        %1040 = vmatpush.msra.mxu0 %v874
        %1041 = vmatmul.f32.gmra.mxu0 %v858
        %v1042 = vpop.f32.mrf.mxu0
        %v1043 = vadd.f32 %v978, %v1042
        %1044 = vmatmul.f32.gmra.mxu0 %v859
        %v1045 = vpop.f32.mrf.mxu0
        %v1046 = vadd.f32 %v981, %v1045
        %1047 = vmatmul.f32.gmra.mxu0 %v860
        %v1048 = vpop.f32.mrf.mxu0
        %v1049 = vadd.f32 %v984, %v1048
        %1050 = vmatmul.f32.gmra.mxu0 %v861
        %v1051 = vpop.f32.mrf.mxu0
        %v1052 = vadd.f32 %v987, %v1051
        %1053 = vmatmul.f32.gmra.mxu0 %v862
        %v1054 = vpop.f32.mrf.mxu0
        %v1055 = vadd.f32 %v990, %v1054
        %1056 = vmatmul.f32.gmra.mxu0 %v863
        %v1057 = vpop.f32.mrf.mxu0
        %v1058 = vadd.f32 %v993, %v1057
        %1059 = vmatmul.f32.gmra.mxu0 %v864
        %v1060 = vpop.f32.mrf.mxu0
        %v1061 = vadd.f32 %v996, %v1060
        %1062 = vmatmul.f32.gmra.mxu0 %v865
        %v1063 = vpop.f32.mrf.mxu0
        %v1064 = vadd.f32 %v999, %v1063
        %1065 = vmatmul.f32.gmra.mxu0 %v866
        %v1066 = vpop.f32.mrf.mxu0
        %v1067 = vadd.f32 %v1002, %v1066
        %1068 = vmatmul.f32.gmra.mxu0 %v867
        %v1069 = vpop.f32.mrf.mxu0
        %v1070 = vadd.f32 %v1005, %v1069
        %1071 = vmatmul.f32.gmra.mxu0 %v868
        %v1072 = vpop.f32.mrf.mxu0
        %v1073 = vadd.f32 %v1008, %v1072
        %1074 = vmatmul.f32.gmra.mxu0 %v869
        %v1075 = vpop.f32.mrf.mxu0
        %v1076 = vadd.f32 %v1011, %v1075
        %1077 = vmatmul.f32.gmra.mxu0 %v870
        %v1078 = vpop.f32.mrf.mxu0
        %v1079 = vadd.f32 %v1014, %v1078
        %1080 = vmatmul.f32.gmra.mxu0 %v871
        %v1081 = vpop.f32.mrf.mxu0
        %v1082 = vadd.f32 %v1017, %v1081
        %1083 = vmatmul.f32.gmra.mxu0 %v872
        %v1084 = vpop.f32.mrf.mxu0
        %v1085 = vadd.f32 %v1020, %v1084
        %1086 = vmatmul.f32.gmra.mxu0 %v873
        %v1087 = vpop.f32.mrf.mxu0
        %v1088 = vadd.f32 %v1023, %v1087
        %1089 = vdwg.mxu0
        %v1090 = vld [vmem:[%s10] sm:$0x1]
        %v1092 = vperm.slane %v1090, 0
        %v1094 = vadd.f32 %v1043, %v1092
        %v1095 = vadd.f32 %v1046, %v1092
        %v1096 = vadd.f32 %v1049, %v1092
        %v1097 = vadd.f32 %v1052, %v1092
        %v1098 = vadd.f32 %v1055, %v1092
        %v1099 = vadd.f32 %v1058, %v1092
        %v1100 = vadd.f32 %v1061, %v1092
        %v1101 = vadd.f32 %v1064, %v1092
        %v1102 = vadd.f32 %v1067, %v1092
        %v1103 = vadd.f32 %v1070, %v1092
        %v1104 = vadd.f32 %v1073, %v1092
        %v1105 = vadd.f32 %v1076, %v1092
        %v1106 = vadd.f32 %v1079, %v1092
        %v1107 = vadd.f32 %v1082, %v1092
        %v1108 = vadd.f32 %v1085, %v1092
        %v1109 = vadd.f32 %v1088, %v1092
        %v1110 = vmax.f32 %v1094, 0.0
        %v1111 = vmax.f32 %v1095, 0.0
        %v1112 = vmax.f32 %v1096, 0.0
        %v1113 = vmax.f32 %v1097, 0.0
        %v1114 = vmax.f32 %v1098, 0.0
        %v1115 = vmax.f32 %v1099, 0.0
        %v1116 = vmax.f32 %v1100, 0.0
        %v1117 = vmax.f32 %v1101, 0.0
        %v1118 = vmax.f32 %v1102, 0.0
        %v1119 = vmax.f32 %v1103, 0.0
        %v1120 = vmax.f32 %v1104, 0.0
        %v1121 = vmax.f32 %v1105, 0.0
        %v1122 = vmax.f32 %v1106, 0.0
        %v1123 = vmax.f32 %v1107, 0.0
        %v1124 = vmax.f32 %v1108, 0.0
        %v1125 = vmax.f32 %v1109, 0.0
        %1126 = vst [vmem:[%s359] sm:$0xff] %v1110
        %1127 = vst [vmem:[%s359 + $0x8] sm:$0xff] %v1111
        %1128 = vst [vmem:[%s359 + $0x10] sm:$0xff] %v1112
        %1129 = vst [vmem:[%s359 + $0x18] sm:$0xff] %v1113
        %1130 = vst [vmem:[%s359 + $0x20] sm:$0xff] %v1114
        %1131 = vst [vmem:[%s359 + $0x28] sm:$0xff] %v1115
        %1132 = vst [vmem:[%s359 + $0x30] sm:$0xff] %v1116
        %1133 = vst [vmem:[%s359 + $0x38] sm:$0xff] %v1117
        %1134 = vst [vmem:[%s359 + $0x40] sm:$0xff] %v1118
        %1135 = vst [vmem:[%s359 + $0x48] sm:$0xff] %v1119
        %1136 = vst [vmem:[%s359 + $0x50] sm:$0xff] %v1120
        %1137 = vst [vmem:[%s359 + $0x58] sm:$0xff] %v1121
        %1138 = vst [vmem:[%s359 + $0x60] sm:$0xff] %v1122
        %1139 = vst [vmem:[%s359 + $0x68] sm:$0xff] %v1123
        %1140 = vst [vmem:[%s359 + $0x70] sm:$0xff] %v1124
        %1141 = vst [vmem:[%s359 + $0x78] sm:$0xff] %v1125
        %s1142 = sand.u32 %s245, 1
        %s1143 = scalar_lea.sflag [#allocation9], %s1142
        %s1144 = sand.u32 %s245, 1
        %s1145 = smul.addr %s1144, 128
        %s1146 = scalar_lea.vmem [#allocation8], %s1145
        // Predicated region
        $region57: #{tpu_custom_call.1} parent=51 // pred_check
          %p1147 = pneg %p255
        $region58: #{tpu_custom_call.1} parent=51 // pred_check_branch
          %1149 = sbr.rel (%p1147) target = $region60
        $region59: #{tpu_custom_call.1} parent=51 // pred_region
          %s1150 = smul.u32 16, %s48
          %1152 = vsyncadd %s1143, 0
          %s1153 = smul.addr %s47, 32
          %s1154 = sadd.s32 %s1150, %s1153
          %s1155 = smul.addr %s1154, 8
          %s1156 = scalar_lea.hbm %s11, %s1155
          %s1157 = sshll.u32 %s1146, 4
          %s1158 = int_to_ptr.vmem [resolvable:$true] %s1157
          %s1159 = sshll.u32 %s1156, 4
          %s1160 = int_to_ptr.hbm [resolvable:$true] %s1159
          %1165 = dma.vmem_to_hbm [thread:$0]  %s1158, 2048, %s1160, %s1143, 128, 128, 8
        $region60: #{tpu_custom_call.1} parent=51 // pred_fallthru
          _
      $region52: #{tpu_custom_call.1} parent=5 // pred_fallthru
        _
      %p1166 = scmp.le.s32.totalorder 2, %s38
      // Predicated region
      $region61: #{tpu_custom_call.1} parent=5 // pred_check
        %p1167 = pneg %p1166
      $region62: #{tpu_custom_call.1} parent=5 // pred_check_branch
        %1169 = sbr.rel (%p1167) target = $region64
      $region63: #{tpu_custom_call.1} parent=5 // pred_region
        %s1170 = ssub.s32 %s38, 2
        // Predicated region
        $region65: #{tpu_custom_call.1} parent=63 // pred_check
          %p1171 = pneg %p261
        $region66: #{tpu_custom_call.1} parent=63 // pred_check_branch
          %1173 = sbr.rel (%p1171) target = $region68
        $region67: #{tpu_custom_call.1} parent=63 // pred_region
          %s1174 = sand.u32 %s246, 1
          %s1175 = scalar_lea.sflag [#allocation9], %s1174
          %s1176 = sand.u32 %s246, 1
          %s1177 = smul.addr %s1176, 128
          %s1178 = scalar_lea.vmem [#allocation8], %s1177
          %1180 = dma.done %s1175, 2048
        $region68: #{tpu_custom_call.1} parent=63 // pred_fallthru
          _
      $region64: #{tpu_custom_call.1} parent=5 // pred_fallthru
        _
    $region6: #{tpu_custom_call.1} parent=1 // loop_footer
      %s42 = sadd.s32 1, %s38
    $region7: #{tpu_custom_call.1} parent=1 // loop_footer_branch
      %37 = sbr.rel target = $region3
    $region8: #{tpu_custom_call.1} parent=1 // loop_exit
      _
    %1181 = vsyncpa [#allocation9], 1
    %s1182 = scalar_lea.sflag [#allocation9], 1
    %1183 = vsyncpa %s1182, 1

</llo_original>
